<compile_context>
chip_gen: v7x
topology: tpu7x:2x2x1
jax: 0.10.0
libtpu: 0.0.40
codegen_flags: <defaults>
</compile_context>

<pallas_src>
import numpy as np
import jax
import jax.numpy as jnp
from jax.experimental import pallas as pl
from jax.experimental.pallas import tpu as pltpu


# Fixed reference architecture (the module's default ConvConfig):
#   input  : (N, 4, 16, 16)  NCHW
#   conv1  : 4 ->  8, k=3, s=1, p=1, ReLU   -> (N,  8, 16, 16)
#   conv2  : 8 -> 16, k=3, s=2, p=1, ReLU   -> (N, 16,  8,  8)
#   flatten (C*H*W = 1024) -> Linear(1024, 10)
_CIN, _H, _W = 4, 16, 16
_C1 = 8                    # conv1 out channels
_C2 = 16                   # conv2 out channels
_HO, _WO = 8, 8            # spatial size after the stride-2 conv
_NCLS = 10
_LANES = 128
_K1 = 224                  # conv1 row-im2col K: 3*18*4 taps + 1 bias lane + pad
_K2 = 3 * _LANES           # conv2 row-im2col K: 3 row taps x (16 cols * 8 ch)
_KH = _HO * _LANES         # head K: 8 output rows x (8 cols * 16 ch)
_R1 = 24                   # conv1 rows computed per sample (3 groups of 8)


def _fused_kernel(a1_ref, w1_ref, w2_ref, b2_ref, w3_ref, b3_ref, out_ref):
    f32 = jnp.float32
    tb = out_ref.shape[0]

    # ---- conv1 (+ bias via the constant-1 input lane) : one matmul + ReLU ----
    a1 = a1_ref[...].reshape(_R1 * tb, _K1)              # rows = (group, oy, b)
    y1 = jnp.maximum(jnp.dot(a1, w1_ref[...], preferred_element_type=f32), 0.0)

    # ---- conv2 at the stride-2 outputs only : lane-aligned concat + matmul ---
    # The three row groups are y1pad rows {2oy-1}, {2oy}, {2oy+1}; the left pad
    # column is absorbed into the packed weight, so no shifting is needed.
    y1v = y1.reshape(3, _HO * tb, _LANES)
    a2 = jnp.concatenate([y1v[0], y1v[1], y1v[2]], axis=-1)        # (8*TB, 384)
    y2 = jnp.maximum(
        jnp.dot(a2, w2_ref[...], preferred_element_type=f32) + b2_ref[...], 0.0)

    # ---- flatten (lane-concat over the 8 output rows) + Linear head ----------
    y2v = y2.reshape(_HO, tb, _LANES)                     # rows were (oy, b)
    h = jnp.concatenate([y2v[r] for r in range(_HO)], axis=-1)     # (TB, 1024)
    out_ref[...] = (jnp.dot(h, w3_ref[...], preferred_element_type=f32)
                    + b3_ref[...])


def _tiling(n: int):
    tb = 64 if n >= 256 else 8            # samples per grid step (multiple of 8)
    g = max(2, (n + tb - 1) // tb)        # >=2 steps so both v7x cores get work
    return tb, g


@jax.jit
def _fused_forward(x_nchw, w1row, w2row, b2row, w3flat, b3row):
    n = x_nchw.shape[0]
    tb, g = _tiling(n)
    npad = g * tb

    # ---- host-side prep: row-band im2col for conv1, rows pre-ordered ---------
    x = jnp.pad(x_nchw.astype(jnp.float32),
                ((0, npad - n), (0, 0), (0, 0), (0, 0)))
    xp = jnp.pad(jnp.transpose(x, (0, 2, 3, 1)),
                 ((0, 0), (1, 1), (1, 1), (0, 0)))                 # (Np,18,18,4)
    # bands[n, r, dr, col, ci] = xp[n, r+dr, col, ci] for output rows r=0..15
    bands = jnp.stack([xp[:, d:d + _H] for d in range(3)], axis=2)
    bands = bands.reshape(npad, _H, 3 * 18 * _CIN)                 # (Np,16,216)
    bands = jnp.concatenate(
        [bands, jnp.ones((npad, _H, 1), jnp.float32)], axis=-1)    # bias lane
    bands = jnp.pad(bands, ((0, 0), (0, 0), (0, _K1 - 217)))       # (Np,16,224)
    zrow = jnp.zeros((npad, 1, _K1), jnp.float32)
    odd, even = bands[:, 1::2], bands[:, 0::2]
    # groups: rows {2oy-1} (zero row for oy=0), {2oy}, {2oy+1}
    a1 = jnp.concatenate([zrow, odd[:, :7], even, odd], axis=1)    # (Np,24,224)
    # block layout (G, 24, TB, 224): batch innermost so every in-kernel reshape
    # is an 8-aligned no-op and every slice is on an outer dim.
    a1 = a1.reshape(g, tb, _R1, _K1).transpose(0, 2, 1, 3)

    flops = 2 * npad * (_R1 * _K1 * _LANES + _HO * _K2 * _LANES + _KH * _LANES)
    bytes_accessed = 4 * (a1.size + w1row.size + w2row.size + b2row.size
                          + w3flat.size + b3row.size + npad * _LANES)

    grid_spec = pltpu.PrefetchScalarGridSpec(
        num_scalar_prefetch=0,
        grid=(g,),
        in_specs=[
            pl.BlockSpec((1, _R1, tb, _K1), lambda b: (b, 0, 0, 0)),  # im2col
            pl.BlockSpec((_K1, _LANES), lambda b: (0, 0)),            # conv1 W
            pl.BlockSpec((_K2, _LANES), lambda b: (0, 0)),            # conv2 W
            pl.BlockSpec((1, _LANES), lambda b: (0, 0)),              # conv2 b
            pl.BlockSpec((_KH, _LANES), lambda b: (0, 0)),            # head W
            pl.BlockSpec((1, _LANES), lambda b: (0, 0)),              # head b
        ],
        out_specs=pl.BlockSpec((tb, _LANES), lambda b: (b, 0)),
    )
    out = pl.pallas_call(
        _fused_kernel,
        out_shape=jax.ShapeDtypeStruct((npad, _LANES), jnp.float32),
        grid_spec=grid_spec,
        compiler_params=pltpu.CompilerParams(
            dimension_semantics=("parallel",)),
        cost_estimate=pl.CostEstimate(flops=flops, transcendentals=0,
                                      bytes_accessed=bytes_accessed),
    )(a1, w1row, w2row, b2row, w3flat, b3row)
    return out[:n, :_NCLS]


class ConvClassifierPallas:
    """ConvClassifier with the default ConvConfig:
    input (4,16,16), kernels [3,3], strides [1,2], padding [1,1],
    num_filters [8,16], use_bias=True, dropout_p=0.0, widths=[] -> Linear(1024,10).
    """

    def __init__(self, key, num_classes=_NCLS):
        assert num_classes == _NCLS
        self.num_classes = num_classes
        ks = jax.random.split(key, 6)
        # Parameters kept in PyTorch layout (OIHW conv weights, (out,in) linear).
        self.w1 = jax.random.normal(ks[0], (_C1, _CIN, 3, 3), jnp.float32) * 0.1
        self.b1 = jax.random.normal(ks[1], (_C1,), jnp.float32) * 0.1
        self.w2 = jax.random.normal(ks[2], (_C2, _C1, 3, 3), jnp.float32) * 0.1
        self.b2 = jax.random.normal(ks[3], (_C2,), jnp.float32) * 0.1
        flat_dim = _C2 * _HO * _WO
        self.lin_w = jax.random.normal(ks[4], (_NCLS, flat_dim), jnp.float32) * 0.05
        self.lin_b = jax.random.normal(ks[5], (_NCLS,), jnp.float32) * 0.05
        self._pack()

    def _pack(self):
        """One-time host repack into the row-matmul layouts used by the kernel."""
        w1 = np.asarray(self.w1); b1 = np.asarray(self.b1)
        w2 = np.asarray(self.w2); b2 = np.asarray(self.b2)
        lw = np.asarray(self.lin_w); lb = np.asarray(self.lin_b)

        # conv1: (K1=224, 128) ; row = dr*72 + col*4 + ci (+ bias row 216),
        # lane = out_col*8 + out_ch.
        w1row = np.zeros((3, 18, _CIN, _W, _C1), np.float32)
        for dr in range(3):
            for dc in range(3):
                for ocol in range(_W):
                    w1row[dr, ocol + dc, :, ocol, :] = w1[:, :, dr, dc].T
        w1row = w1row.reshape(216, _LANES)
        bias_row = np.tile(b1, _W)[None, :]
        w1row = np.concatenate(
            [w1row, bias_row, np.zeros((_K1 - 217, _LANES), np.float32)], axis=0)

        # conv2: (K2=384, 128) ; row = dr*128 + in_col*8 + in_ch,
        # lane = out_col*16 + out_ch (left pad column dropped: its input is 0).
        w2row = np.zeros((3, _W, _C1, _WO, _C2), np.float32)
        for dr in range(3):
            for dc in range(3):
                for ox in range(_WO):
                    icol = 2 * ox + dc - 1
                    if 0 <= icol < _W:
                        w2row[dr, icol, :, ox, :] = w2[:, :, dr, dc].T
        w2row = w2row.reshape(_K2, _LANES)
        b2row = np.tile(b2, _WO)[None, :]

        # head: (1024, 128) ; row = oy*128 + ox*16 + co (matches the kernel's
        # lane-concatenated flatten), column = class (PyTorch C*H*W order).
        w3 = np.zeros((_HO, _WO, _C2, _LANES), np.float32)
        w3[:, :, :, :_NCLS] = lw.reshape(_NCLS, _C2, _HO, _WO).transpose(2, 3, 1, 0)
        w3flat = w3.reshape(_KH, _LANES)
        b3row = np.zeros((1, _LANES), np.float32)
        b3row[0, :_NCLS] = lb

        self.w1row = jnp.asarray(w1row)
        self.w2row = jnp.asarray(w2row)
        self.b2row = jnp.asarray(b2row)
        self.w3flat = jnp.asarray(w3flat)
        self.b3row = jnp.asarray(b3row)

    def forward(self, x_nchw):
        return _fused_forward(x_nchw, self.w1row, self.w2row, self.b2row,
                              self.w3flat, self.b3row)


def _reference_forward(model, x_nchw):
    """Pure-JAX reference (mirrors the PyTorch module)."""
    y = x_nchw
    for w, b, s in ((model.w1, model.b1, 1), (model.w2, model.b2, 2)):
        y = jax.lax.conv_general_dilated(
            y, w, window_strides=(s, s), padding=((1, 1), (1, 1)),
            dimension_numbers=("NCHW", "OIHW", "NCHW"))
        y = jnp.maximum(y + b[None, :, None, None], 0.0)
    flat = y.reshape(y.shape[0], -1)                 # NCHW flatten (C*H*W)
    return flat @ model.lin_w.T + model.lin_b


if __name__ == "__main__":
    key = jax.random.PRNGKey(0)
    key, xkey, xkey2 = jax.random.split(key, 3)

    model = ConvClassifierPallas(key)

    # Small shapes consistent with the module: batch=2, channels=4, 16x16.
    x = jax.random.normal(xkey, (2, _CIN, _H, _W), jnp.float32)
    logits = jax.block_until_ready(model.forward(x))
    assert logits.shape == (2, _NCLS)
    assert bool(jnp.all(jnp.isfinite(logits)))
    ref = _reference_forward(model, x)
    err = float(jnp.max(jnp.abs(logits - ref)))
    assert bool(jnp.allclose(logits, ref, atol=2e-3, rtol=2e-3)), err

    # Second check exercising batch padding + multiple samples per step.
    x6 = jax.random.normal(xkey2, (6, _CIN, _H, _W), jnp.float32)
    logits6 = jax.block_until_ready(model.forward(x6))
    ref6 = _reference_forward(model, x6)
    err6 = float(jnp.max(jnp.abs(logits6 - ref6)))
    assert bool(jnp.allclose(logits6, ref6, atol=2e-3, rtol=2e-3)), err6

    print("KERNEL_OK")
</pallas_src>

<mosaic_0001>
module attributes {stable_mosaic.version = 11 : i64} {
  func.func @_fused_kernel(%arg0: i32, %arg1: memref<1x24x8x224xf32, #tpu.memory_space<vmem>>, %arg2: memref<224x128xf32, #tpu.memory_space<vmem>>, %arg3: memref<384x128xf32, #tpu.memory_space<vmem>>, %arg4: memref<1x128xf32, #tpu.memory_space<vmem>>, %arg5: memref<1024x128xf32, #tpu.memory_space<vmem>>, %arg6: memref<1x128xf32, #tpu.memory_space<vmem>>, %arg7: memref<8x128xf32, #tpu.memory_space<vmem>>) attributes {dimension_semantics = [#tpu.dimension_semantics<parallel>], iteration_bounds = array<i64: 2>, scalar_prefetch = 0 : i64, scratch_operands = 0 : i64, tpu.core_type = #tpu.core_type<tc>, window_params = [{transform_indices = @transform_0, window_bounds = array<i64: 1, 24, 8, 224>}, {pipeline_mode = #tpu.pipeline_mode<synchronous>, transform_indices = @transform_1, window_bounds = array<i64: 224, 128>}, {pipeline_mode = #tpu.pipeline_mode<synchronous>, transform_indices = @transform_2, window_bounds = array<i64: 384, 128>}, {pipeline_mode = #tpu.pipeline_mode<synchronous>, transform_indices = @transform_3, window_bounds = array<i64: 1, 128>}, {pipeline_mode = #tpu.pipeline_mode<synchronous>, transform_indices = @transform_4, window_bounds = array<i64: 1024, 128>}, {pipeline_mode = #tpu.pipeline_mode<synchronous>, transform_indices = @transform_5, window_bounds = array<i64: 1, 128>}, {transform_indices = @transform_6, window_bounds = array<i64: 8, 128>}]} {
    %c0 = arith.constant 0 : index
    %c0_0 = arith.constant 0 : index
    %c0_1 = arith.constant 0 : index
    %c0_2 = arith.constant 0 : index
    %0 = vector.load %arg1[%c0, %c0_0, %c0_1, %c0_2] : memref<1x24x8x224xf32, #tpu.memory_space<vmem>>, vector<1x24x8x224xf32>
    %1 = vector.shape_cast %0 : vector<1x24x8x224xf32> to vector<192x224xf32>
    %c0_3 = arith.constant 0 : index
    %c0_4 = arith.constant 0 : index
    %2 = vector.load %arg2[%c0_3, %c0_4] : memref<224x128xf32, #tpu.memory_space<vmem>>, vector<224x128xf32>
    %cst = arith.constant dense<0.000000e+00> : vector<192x128xf32>
    %3 = tpu.matmul %1, %2, %cst {dimension_numbers = #tpu.dot_dimension_numbers<[1], [0], [0], [1], [0, 0, 1, 1], [], []>} : vector<192x224xf32>, vector<224x128xf32>, vector<192x128xf32> -> vector<192x128xf32>
    %cst_5 = arith.constant 0.000000e+00 : f32
    %4 = vector.broadcast %cst_5 : f32 to vector<192x128xf32>
    %5 = arith.maximumf %3, %4 : vector<192x128xf32>
    %6 = vector.shape_cast %5 : vector<192x128xf32> to vector<3x64x128xf32>
    %7 = vector.extract_strided_slice %6 {offsets = [0, 0, 0], sizes = [1, 64, 128], strides = [1, 1, 1]} : vector<3x64x128xf32> to vector<1x64x128xf32>
    %8 = vector.shape_cast %7 : vector<1x64x128xf32> to vector<64x128xf32>
    %9 = vector.extract_strided_slice %6 {offsets = [1, 0, 0], sizes = [1, 64, 128], strides = [1, 1, 1]} : vector<3x64x128xf32> to vector<1x64x128xf32>
    %10 = vector.shape_cast %9 : vector<1x64x128xf32> to vector<64x128xf32>
    %11 = vector.extract_strided_slice %6 {offsets = [2, 0, 0], sizes = [1, 64, 128], strides = [1, 1, 1]} : vector<3x64x128xf32> to vector<1x64x128xf32>
    %12 = vector.shape_cast %11 : vector<1x64x128xf32> to vector<64x128xf32>
    %13 = tpu.concatenate %8, %10, %12 in 1 : vector<64x128xf32>, vector<64x128xf32>, vector<64x128xf32> -> vector<64x384xf32>
    %c0_6 = arith.constant 0 : index
    %c0_7 = arith.constant 0 : index
    %14 = vector.load %arg3[%c0_6, %c0_7] : memref<384x128xf32, #tpu.memory_space<vmem>>, vector<384x128xf32>
    %cst_8 = arith.constant dense<0.000000e+00> : vector<64x128xf32>
    %15 = tpu.matmul %13, %14, %cst_8 {dimension_numbers = #tpu.dot_dimension_numbers<[1], [0], [0], [1], [0, 0, 1, 1], [], []>} : vector<64x384xf32>, vector<384x128xf32>, vector<64x128xf32> -> vector<64x128xf32>
    %c0_9 = arith.constant 0 : index
    %c0_10 = arith.constant 0 : index
    %16 = vector.load %arg4[%c0_9, %c0_10] : memref<1x128xf32, #tpu.memory_space<vmem>>, vector<1x128xf32>
    %17 = vector.broadcast %16 : vector<1x128xf32> to vector<64x128xf32>
    %18 = arith.addf %15, %17 : vector<64x128xf32>
    %cst_11 = arith.constant 0.000000e+00 : f32
    %19 = vector.broadcast %cst_11 : f32 to vector<64x128xf32>
    %20 = arith.maximumf %18, %19 : vector<64x128xf32>
    %21 = vector.shape_cast %20 : vector<64x128xf32> to vector<8x8x128xf32>
    %22 = vector.extract_strided_slice %21 {offsets = [0, 0, 0], sizes = [1, 8, 128], strides = [1, 1, 1]} : vector<8x8x128xf32> to vector<1x8x128xf32>
    %23 = vector.shape_cast %22 : vector<1x8x128xf32> to vector<8x128xf32>
    %24 = vector.extract_strided_slice %21 {offsets = [1, 0, 0], sizes = [1, 8, 128], strides = [1, 1, 1]} : vector<8x8x128xf32> to vector<1x8x128xf32>
    %25 = vector.shape_cast %24 : vector<1x8x128xf32> to vector<8x128xf32>
    %26 = vector.extract_strided_slice %21 {offsets = [2, 0, 0], sizes = [1, 8, 128], strides = [1, 1, 1]} : vector<8x8x128xf32> to vector<1x8x128xf32>
    %27 = vector.shape_cast %26 : vector<1x8x128xf32> to vector<8x128xf32>
    %28 = vector.extract_strided_slice %21 {offsets = [3, 0, 0], sizes = [1, 8, 128], strides = [1, 1, 1]} : vector<8x8x128xf32> to vector<1x8x128xf32>
    %29 = vector.shape_cast %28 : vector<1x8x128xf32> to vector<8x128xf32>
    %30 = vector.extract_strided_slice %21 {offsets = [4, 0, 0], sizes = [1, 8, 128], strides = [1, 1, 1]} : vector<8x8x128xf32> to vector<1x8x128xf32>
    %31 = vector.shape_cast %30 : vector<1x8x128xf32> to vector<8x128xf32>
    %32 = vector.extract_strided_slice %21 {offsets = [5, 0, 0], sizes = [1, 8, 128], strides = [1, 1, 1]} : vector<8x8x128xf32> to vector<1x8x128xf32>
    %33 = vector.shape_cast %32 : vector<1x8x128xf32> to vector<8x128xf32>
    %34 = vector.extract_strided_slice %21 {offsets = [6, 0, 0], sizes = [1, 8, 128], strides = [1, 1, 1]} : vector<8x8x128xf32> to vector<1x8x128xf32>
    %35 = vector.shape_cast %34 : vector<1x8x128xf32> to vector<8x128xf32>
    %36 = vector.extract_strided_slice %21 {offsets = [7, 0, 0], sizes = [1, 8, 128], strides = [1, 1, 1]} : vector<8x8x128xf32> to vector<1x8x128xf32>
    %37 = vector.shape_cast %36 : vector<1x8x128xf32> to vector<8x128xf32>
    %38 = tpu.concatenate %23, %25, %27, %29, %31, %33, %35, %37 in 1 : vector<8x128xf32>, vector<8x128xf32>, vector<8x128xf32>, vector<8x128xf32>, vector<8x128xf32>, vector<8x128xf32>, vector<8x128xf32>, vector<8x128xf32> -> vector<8x1024xf32>
    %c0_12 = arith.constant 0 : index
    %c0_13 = arith.constant 0 : index
    %39 = vector.load %arg5[%c0_12, %c0_13] : memref<1024x128xf32, #tpu.memory_space<vmem>>, vector<1024x128xf32>
    %cst_14 = arith.constant dense<0.000000e+00> : vector<8x128xf32>
    %40 = tpu.matmul %38, %39, %cst_14 {dimension_numbers = #tpu.dot_dimension_numbers<[1], [0], [0], [1], [0, 0, 1, 1], [], []>} : vector<8x1024xf32>, vector<1024x128xf32>, vector<8x128xf32> -> vector<8x128xf32>
    %c0_15 = arith.constant 0 : index
    %c0_16 = arith.constant 0 : index
    %41 = vector.load %arg6[%c0_15, %c0_16] : memref<1x128xf32, #tpu.memory_space<vmem>>, vector<1x128xf32>
    %42 = vector.broadcast %41 : vector<1x128xf32> to vector<8x128xf32>
    %43 = arith.addf %40, %42 : vector<8x128xf32>
    %c0_17 = arith.constant 0 : index
    %c0_18 = arith.constant 0 : index
    %44 = vector.load %arg7[%c0_17, %c0_18] : memref<8x128xf32, #tpu.memory_space<vmem>>, vector<8x128xf32>
    tpu.vector_store %arg7[%c0_17, %c0_18], %43 {strides = array<i32>} : memref<8x128xf32, #tpu.memory_space<vmem>>, vector<8x128xf32>,
    return
  }
  func.func @transform_0(%arg0: i32) -> (i32, i32, i32, i32) {
    %c0_i32 = arith.constant 0 : i32
    %c0_i32_0 = arith.constant 0 : i32
    %c0_i32_1 = arith.constant 0 : i32
    %c0_i32_2 = arith.constant 0 : i32
    return %arg0, %c0_i32, %c0_i32_0, %c0_i32_1 : i32, i32, i32, i32
  }
  func.func @transform_1(%arg0: i32) -> (i32, i32) {
    %c0_i32 = arith.constant 0 : i32
    %c0_i32_0 = arith.constant 0 : i32
    %c0_i32_1 = arith.constant 0 : i32
    return %c0_i32, %c0_i32_0 : i32, i32
  }
  func.func @transform_2(%arg0: i32) -> (i32, i32) {
    %c0_i32 = arith.constant 0 : i32
    %c0_i32_0 = arith.constant 0 : i32
    %c0_i32_1 = arith.constant 0 : i32
    return %c0_i32, %c0_i32_0 : i32, i32
  }
  func.func @transform_3(%arg0: i32) -> (i32, i32) {
    %c0_i32 = arith.constant 0 : i32
    %c0_i32_0 = arith.constant 0 : i32
    %c0_i32_1 = arith.constant 0 : i32
    return %c0_i32, %c0_i32_0 : i32, i32
  }
  func.func @transform_4(%arg0: i32) -> (i32, i32) {
    %c0_i32 = arith.constant 0 : i32
    %c0_i32_0 = arith.constant 0 : i32
    %c0_i32_1 = arith.constant 0 : i32
    return %c0_i32, %c0_i32_0 : i32, i32
  }
  func.func @transform_5(%arg0: i32) -> (i32, i32) {
    %c0_i32 = arith.constant 0 : i32
    %c0_i32_0 = arith.constant 0 : i32
    %c0_i32_1 = arith.constant 0 : i32
    return %c0_i32, %c0_i32_0 : i32, i32
  }
  func.func @transform_6(%arg0: i32) -> (i32, i32) {
    %c0_i32 = arith.constant 0 : i32
    %c0_i32_0 = arith.constant 0 : i32
    return %arg0, %c0_i32 : i32, i32
  }
}

</mosaic_0001>

<llo_original>
// kernel: _fused_forward.1
$region0: #{_fused_forward.1}
  #allocation0 [shape = 'u32[]', space=smem, size = 0x4, offset = 0x4, fixed_abs, tag = 'smem constant byte address 0x4 - core index']
  #allocation1 [shape = 'u32[144,128]{1,0:T(1,128)}', space=vmem, size = 0x12000, scoped, tag = 'internal scratch']
  %s0 = inlined_call_operand.vmem [shape: f32[2,24,8,224], index: 0, kind: input, shape index: {}]
  %s1 = inlined_call_operand.vmem [shape: f32[224,128], index: 1, kind: input, shape index: {}]
  %s2 = inlined_call_operand.vmem [shape: f32[384,128], index: 2, kind: input, shape index: {}]
  %s3 = inlined_call_operand.vmem [shape: f32[1,128], index: 3, kind: input, shape index: {}]
  %s4 = inlined_call_operand.vmem [shape: f32[1024,128], index: 4, kind: input, shape index: {}]
  %s5 = inlined_call_operand.vmem [shape: f32[1,128], index: 5, kind: input, shape index: {}]
  %s6 = inlined_call_operand.vmem [shape: f32[16,128], index: 6, kind: output, shape index: {}]
  %s7 = sld [smem:[#allocation0]]
  $region57: #{_fused_forward.1} parent=0
    _
  %s9 = ssub.s32 1, %s7
  %s10 = scalar_select 0, %s9, %s7
  loop: start=0, step=1, limit=4
  $region2: #{_fused_forward.1} parent=0 // loop_pre_header
    _
  $region3: #{_fused_forward.1} parent=0 // loop_header
    %s12 = sphi 0, %s16
    %p13 = scmp.ge.s32.totalorder %s12, 4
    %s22 = sphi 0, %s24
    %s25 = sphi 0, %s22
    %s26 = sphi 0, %s25
    %s42 = sphi 0, %s26
    %s46 = sphi 0, %s46
    %s48 = sphi 0, %s46
    %s49 = sphi 0, %s48
    %s63 = sphi 0, %s49
    %s67 = sphi 0, %s67
    %s69 = sphi 0, %s67
    %s70 = sphi 0, %s69
    %s84 = sphi 0, %s70
    %s88 = sphi 0, %s88
    %s90 = sphi 0, %s88
    %s91 = sphi 0, %s90
    %s105 = sphi 0, %s91
    %s109 = sphi 0, %s109
    %s111 = sphi 0, %s109
    %s112 = sphi 0, %s111
    %s126 = sphi 0, %s112
    %s130 = sphi 0, %s130
    %s132 = sphi 0, %s130
    %s133 = sphi 0, %s132
    %s147 = sphi 0, %s133
    %s153 = sphi 0, %s155
    %s156 = sphi 0, %s153
    %s157 = sphi 0, %s156
    %s173 = sphi 0, %s157
  $region4: #{_fused_forward.1} parent=0 // loop_header_branch
    %15 = sbr.rel (%p13) target = $region8
  $region5: #{_fused_forward.1} parent=0 // loop_body
    %s17 = ssub.s32 %s12, 1
    %s18 = ssub.s32 %s12, 2
    %s19 = sadd.s32 %s12, 1
    %s20 = ssub.s32 %s12, %s19
    %p21 = scmp.eq.s32.totalorder %s20, 0
    %s23 = sadd.s32 %s22, 1
    %s24 = scalar_select %p21, %s22, %s23
    %p27 = pneg %p21
    %p28 = scmp.eq.s32.totalorder %s12, 1
    %p29 = por %p27, %p28
    %p30 = scmp.ne.s32.totalorder %s22, %s25
    %p31 = scmp.eq.s32.totalorder %s12, 0
    %p32 = por %p30, %p31
    %p33 = scmp.ne.s32.totalorder %s22, %s25
    %p34 = scmp.eq.s32.totalorder %s17, 1
    %p35 = por %p33, %p34
    %p36 = scmp.ne.s32.totalorder %s25, %s26
    %p37 = scmp.eq.s32.totalorder %s17, 0
    %p38 = por %p36, %p37
    %p39 = scmp.ne.s32.totalorder %s25, %s26
    %p40 = scmp.eq.s32.totalorder %s18, 1
    %p41 = por %p39, %p40
    %p43 = scmp.ne.s32.totalorder %s26, %s42
    %p44 = scmp.eq.s32.totalorder %s18, 0
    %p45 = por %p43, %p44
    %s47 = sadd.s32 %s46, 1
    %p50 = scmp.eq.s32.totalorder %s12, 1
    %p51 = scmp.ne.s32.totalorder %s46, %s48
    %p52 = scmp.eq.s32.totalorder %s12, 0
    %p53 = por %p51, %p52
    %p54 = scmp.ne.s32.totalorder %s46, %s48
    %p55 = scmp.eq.s32.totalorder %s17, 1
    %p56 = por %p54, %p55
    %p57 = scmp.ne.s32.totalorder %s48, %s49
    %p58 = scmp.eq.s32.totalorder %s17, 0
    %p59 = por %p57, %p58
    %p60 = scmp.ne.s32.totalorder %s48, %s49
    %p61 = scmp.eq.s32.totalorder %s18, 1
    %p62 = por %p60, %p61
    %p64 = scmp.ne.s32.totalorder %s49, %s63
    %p65 = scmp.eq.s32.totalorder %s18, 0
    %p66 = por %p64, %p65
    %s68 = sadd.s32 %s67, 1
    %p71 = scmp.eq.s32.totalorder %s12, 1
    %p72 = scmp.ne.s32.totalorder %s67, %s69
    %p73 = scmp.eq.s32.totalorder %s12, 0
    %p74 = por %p72, %p73
    %p75 = scmp.ne.s32.totalorder %s67, %s69
    %p76 = scmp.eq.s32.totalorder %s17, 1
    %p77 = por %p75, %p76
    %p78 = scmp.ne.s32.totalorder %s69, %s70
    %p79 = scmp.eq.s32.totalorder %s17, 0
    %p80 = por %p78, %p79
    %p81 = scmp.ne.s32.totalorder %s69, %s70
    %p82 = scmp.eq.s32.totalorder %s18, 1
    %p83 = por %p81, %p82
    %p85 = scmp.ne.s32.totalorder %s70, %s84
    %p86 = scmp.eq.s32.totalorder %s18, 0
    %p87 = por %p85, %p86
    %s89 = sadd.s32 %s88, 1
    %p92 = scmp.eq.s32.totalorder %s12, 1
    %p93 = scmp.ne.s32.totalorder %s88, %s90
    %p94 = scmp.eq.s32.totalorder %s12, 0
    %p95 = por %p93, %p94
    %p96 = scmp.ne.s32.totalorder %s88, %s90
    %p97 = scmp.eq.s32.totalorder %s17, 1
    %p98 = por %p96, %p97
    %p99 = scmp.ne.s32.totalorder %s90, %s91
    %p100 = scmp.eq.s32.totalorder %s17, 0
    %p101 = por %p99, %p100
    %p102 = scmp.ne.s32.totalorder %s90, %s91
    %p103 = scmp.eq.s32.totalorder %s18, 1
    %p104 = por %p102, %p103
    %p106 = scmp.ne.s32.totalorder %s91, %s105
    %p107 = scmp.eq.s32.totalorder %s18, 0
    %p108 = por %p106, %p107
    %s110 = sadd.s32 %s109, 1
    %p113 = scmp.eq.s32.totalorder %s12, 1
    %p114 = scmp.ne.s32.totalorder %s109, %s111
    %p115 = scmp.eq.s32.totalorder %s12, 0
    %p116 = por %p114, %p115
    %p117 = scmp.ne.s32.totalorder %s109, %s111
    %p118 = scmp.eq.s32.totalorder %s17, 1
    %p119 = por %p117, %p118
    %p120 = scmp.ne.s32.totalorder %s111, %s112
    %p121 = scmp.eq.s32.totalorder %s17, 0
    %p122 = por %p120, %p121
    %p123 = scmp.ne.s32.totalorder %s111, %s112
    %p124 = scmp.eq.s32.totalorder %s18, 1
    %p125 = por %p123, %p124
    %p127 = scmp.ne.s32.totalorder %s112, %s126
    %p128 = scmp.eq.s32.totalorder %s18, 0
    %p129 = por %p127, %p128
    %s131 = sadd.s32 %s130, 1
    %p134 = scmp.eq.s32.totalorder %s12, 1
    %p135 = scmp.ne.s32.totalorder %s130, %s132
    %p136 = scmp.eq.s32.totalorder %s12, 0
    %p137 = por %p135, %p136
    %p138 = scmp.ne.s32.totalorder %s130, %s132
    %p139 = scmp.eq.s32.totalorder %s17, 1
    %p140 = por %p138, %p139
    %p141 = scmp.ne.s32.totalorder %s132, %s133
    %p142 = scmp.eq.s32.totalorder %s17, 0
    %p143 = por %p141, %p142
    %p144 = scmp.ne.s32.totalorder %s132, %s133
    %p145 = scmp.eq.s32.totalorder %s18, 1
    %p146 = por %p144, %p145
    %p148 = scmp.ne.s32.totalorder %s133, %s147
    %p149 = scmp.eq.s32.totalorder %s18, 0
    %p150 = por %p148, %p149
    %s151 = ssub.s32 %s12, %s19
    %p152 = scmp.eq.s32.totalorder %s151, 0
    %s154 = sadd.s32 %s153, 1
    %s155 = scalar_select %p152, %s153, %s154
    %p158 = pneg %p152
    %p159 = scmp.eq.s32.totalorder %s12, 1
    %p160 = por %p158, %p159
    %p161 = scmp.ne.s32.totalorder %s153, %s156
    %p162 = scmp.eq.s32.totalorder %s12, 0
    %p163 = por %p161, %p162
    %p164 = scmp.ne.s32.totalorder %s153, %s156
    %p165 = scmp.eq.s32.totalorder %s17, 1
    %p166 = por %p164, %p165
    %p167 = scmp.ne.s32.totalorder %s156, %s157
    %p168 = scmp.eq.s32.totalorder %s17, 0
    %p169 = por %p167, %p168
    %p170 = scmp.ne.s32.totalorder %s156, %s157
    %p171 = scmp.eq.s32.totalorder %s18, 1
    %p172 = por %p170, %p171
    %p174 = scmp.ne.s32.totalorder %s157, %s173
    %p175 = scmp.eq.s32.totalorder %s18, 0
    %p176 = por %p174, %p175
    %p177 = scmp.le.s32.totalorder 1, %s12
    %p178 = scmp.lt.s32.totalorder %s12, 3
    %p179 = pnand %p177, %p178
    %p180 = pneg %p179
    // Predicated region
    $region9: #{_fused_forward.1} parent=5 // pred_check
      _
    $region10: #{_fused_forward.1} parent=5 // pred_check_branch
      %182 = sbr.rel (%p179) target = $region12
    $region11: #{_fused_forward.1} parent=5 // pred_region
      %s183 = ssub.s32 %s12, 1
      // Predicated region
      $region13: #{_fused_forward.1} parent=11 // pred_check
        %p184 = pneg %p59
      $region14: #{_fused_forward.1} parent=11 // pred_check_branch
        %186 = sbr.rel (%p184) target = $region16
      $region15: #{_fused_forward.1} parent=11 // pred_region
        _
      $region16: #{_fused_forward.1} parent=11 // pred_fallthru
        _
      // Predicated region
      $region17: #{_fused_forward.1} parent=11 // pred_check
        %p187 = pneg %p80
      $region18: #{_fused_forward.1} parent=11 // pred_check_branch
        %189 = sbr.rel (%p187) target = $region20
      $region19: #{_fused_forward.1} parent=11 // pred_region
        _
      $region20: #{_fused_forward.1} parent=11 // pred_fallthru
        _
      // Predicated region
      $region21: #{_fused_forward.1} parent=11 // pred_check
        %p190 = pneg %p101
      $region22: #{_fused_forward.1} parent=11 // pred_check_branch
        %192 = sbr.rel (%p190) target = $region24
      $region23: #{_fused_forward.1} parent=11 // pred_region
        _
      $region24: #{_fused_forward.1} parent=11 // pred_fallthru
        _
      // Predicated region
      $region25: #{_fused_forward.1} parent=11 // pred_check
        %p193 = pneg %p122
      $region26: #{_fused_forward.1} parent=11 // pred_check_branch
        %195 = sbr.rel (%p193) target = $region28
      $region27: #{_fused_forward.1} parent=11 // pred_region
        _
      $region28: #{_fused_forward.1} parent=11 // pred_fallthru
        _
      // Predicated region
      $region29: #{_fused_forward.1} parent=11 // pred_check
        %p196 = pneg %p143
      $region30: #{_fused_forward.1} parent=11 // pred_check_branch
        %198 = sbr.rel (%p196) target = $region32
      $region31: #{_fused_forward.1} parent=11 // pred_region
        _
      $region32: #{_fused_forward.1} parent=11 // pred_fallthru
        _
    $region12: #{_fused_forward.1} parent=5 // pred_fallthru
      _
    %p199 = scmp.lt.s32.totalorder %s12, 2
    // Predicated region
    $region33: #{_fused_forward.1} parent=5 // pred_check
      %p200 = pneg %p199
    $region34: #{_fused_forward.1} parent=5 // pred_check_branch
      %202 = sbr.rel (%p200) target = $region36
    $region35: #{_fused_forward.1} parent=5 // pred_region
      // Predicated region
      $region37: #{_fused_forward.1} parent=35 // pred_check
        %p203 = pneg %p32
      $region38: #{_fused_forward.1} parent=35 // pred_check_branch
        %205 = sbr.rel (%p203) target = $region40
      $region39: #{_fused_forward.1} parent=35 // pred_region
        %p206 = scmp.lt.s32.totalorder %s12, 1
        %s207 = scalar_select %p206, %s12, 1
        %s208 = smul.addr %s207, 48
        %s209 = smul.addr %s208, 8
        %s210 = scalar_lea.vmem %s0, %s209
      $region40: #{_fused_forward.1} parent=35 // pred_fallthru
        _
    $region36: #{_fused_forward.1} parent=5 // pred_fallthru
      _
    %p211 = scmp.le.s32.totalorder 1, %s12
    %p212 = scmp.lt.s32.totalorder %s12, 3
    %p213 = pnand %p211, %p212
    %p214 = pneg %p213
    // Predicated region
    $region41: #{_fused_forward.1} parent=5 // pred_check
      _
    $region42: #{_fused_forward.1} parent=5 // pred_check_branch
      %216 = sbr.rel (%p213) target = $region44
    $region43: #{_fused_forward.1} parent=5 // pred_region
      %s217 = ssub.s32 %s12, 1
      %p218 = scmp.lt.s32.totalorder %s17, 1
      %s219 = scalar_select %p218, %s17, 1
      %s220 = smul.addr %s219, 48
      %s221 = smul.addr %s220, 8
      %s222 = scalar_lea.vmem %s0, %s221
      %p223 = pneg %p38
      %p224 = pneg %p35
      %p225 = pneg %p59
      %p226 = pneg %p56
      %p227 = pneg %p80
      %p228 = pneg %p77
      %p229 = pneg %p101
      %p230 = pneg %p98
      %p231 = pneg %p122
      %p232 = pneg %p119
      %p233 = pneg %p143
      %p234 = pneg %p140
      %p235 = pneg %p169
      %p236 = pneg %p166
      %p237 = scmp.lt.s32.totalorder %s17, 1
      %s238 = scalar_select %p237, %s17, 1
      %s239 = smul.addr %s238, 8
      %s240 = scalar_lea.vmem %s6, %s239
      %p241 = scmp.lt.s32.totalorder %s17, 1
      %s242 = scalar_select %p241, %s17, 1
      %s243 = smul.addr %s242, 48
      %s244 = smul.addr %s243, 8
      %s245 = scalar_lea.vmem %s0, %s244
      %p246 = scmp.lt.s32.totalorder %s17, 1
      %s247 = scalar_select %p246, %s17, 1
      %s248 = smul.addr %s247, 8
      %s249 = scalar_lea.vmem %s6, %s248
      %v250 = vld [vmem:[%s245] sm:$0xff]
      %v251 = vld [vmem:[%s245 + $0x8] sm:$0xff]
      %v252 = vld [vmem:[%s245 + $0x10] sm:$0xff]
      %v253 = vld [vmem:[%s245 + $0x18] sm:$0xff]
      %v254 = vld [vmem:[%s245 + $0x20] sm:$0xff]
      %v255 = vld [vmem:[%s245 + $0x28] sm:$0xff]
      %v256 = vld [vmem:[%s245 + $0x30] sm:$0xff]
      %v257 = vld [vmem:[%s245 + $0x38] sm:$0xff]
      %v258 = vld [vmem:[%s245 + $0x40] sm:$0xff]
      %v259 = vld [vmem:[%s245 + $0x48] sm:$0xff]
      %v260 = vld [vmem:[%s245 + $0x50] sm:$0xff]
      %v261 = vld [vmem:[%s245 + $0x58] sm:$0xff]
      %v262 = vld [vmem:[%s245 + $0x60] sm:$0xff]
      %v263 = vld [vmem:[%s245 + $0x68] sm:$0xff]
      %v264 = vld [vmem:[%s245 + $0x70] sm:$0xff]
      %v265 = vld [vmem:[%s245 + $0x78] sm:$0xff]
      %v266 = vld [vmem:[%s245 + $0x80] sm:$0xff]
      %v267 = vld [vmem:[%s245 + $0x88] sm:$0xff]
      %v268 = vld [vmem:[%s245 + $0x90] sm:$0xff]
      %v269 = vld [vmem:[%s245 + $0x98] sm:$0xff]
      %v270 = vld [vmem:[%s245 + $0xa0] sm:$0xff]
      %v271 = vld [vmem:[%s245 + $0xa8] sm:$0xff]
      %v272 = vld [vmem:[%s245 + $0xb0] sm:$0xff]
      %v273 = vld [vmem:[%s245 + $0xb8] sm:$0xff]
      %v274 = vld [vmem:[%s245 + $0xc0] sm:$0xff]
      %v275 = vld [vmem:[%s245 + $0xc8] sm:$0xff]
      %v276 = vld [vmem:[%s245 + $0xd0] sm:$0xff]
      %v277 = vld [vmem:[%s245 + $0xd8] sm:$0xff]
      %v278 = vld [vmem:[%s245 + $0xe0] sm:$0xff]
      %v279 = vld [vmem:[%s245 + $0xe8] sm:$0xff]
      %v280 = vld [vmem:[%s245 + $0xf0] sm:$0xff]
      %v281 = vld [vmem:[%s245 + $0xf8] sm:$0xff]
      %v282 = vld [vmem:[%s245 + $0x100] sm:$0xff]
      %v283 = vld [vmem:[%s245 + $0x108] sm:$0xff]
      %v284 = vld [vmem:[%s245 + $0x110] sm:$0xff]
      %v285 = vld [vmem:[%s245 + $0x118] sm:$0xff]
      %v286 = vld [vmem:[%s245 + $0x120] sm:$0xff]
      %v287 = vld [vmem:[%s245 + $0x128] sm:$0xff]
      %v288 = vld [vmem:[%s245 + $0x130] sm:$0xff]
      %v289 = vld [vmem:[%s245 + $0x138] sm:$0xff]
      %v290 = vld [vmem:[%s245 + $0x140] sm:$0xff]
      %v291 = vld [vmem:[%s245 + $0x148] sm:$0xff]
      %v292 = vld [vmem:[%s245 + $0x150] sm:$0xff]
      %v293 = vld [vmem:[%s245 + $0x158] sm:$0xff]
      %v294 = vld [vmem:[%s245 + $0x160] sm:$0xff]
      %v295 = vld [vmem:[%s245 + $0x168] sm:$0xff]
      %v296 = vld [vmem:[%s245 + $0x170] sm:$0xff]
      %v297 = vld [vmem:[%s245 + $0x178] sm:$0xff]
      %v298 = vld [vmem:[%s1] sm:$0xff]
      %v299 = vld [vmem:[%s1 + $0x8] sm:$0xff]
      %v300 = vld [vmem:[%s1 + $0x10] sm:$0xff]
      %v301 = vld [vmem:[%s1 + $0x18] sm:$0xff]
      %v302 = vld [vmem:[%s1 + $0x20] sm:$0xff]
      %v303 = vld [vmem:[%s1 + $0x28] sm:$0xff]
      %v304 = vld [vmem:[%s1 + $0x30] sm:$0xff]
      %v305 = vld [vmem:[%s1 + $0x38] sm:$0xff]
      %v306 = vld [vmem:[%s1 + $0x40] sm:$0xff]
      %v307 = vld [vmem:[%s1 + $0x48] sm:$0xff]
      %v308 = vld [vmem:[%s1 + $0x50] sm:$0xff]
      %v309 = vld [vmem:[%s1 + $0x58] sm:$0xff]
      %v310 = vld [vmem:[%s1 + $0x60] sm:$0xff]
      %v311 = vld [vmem:[%s1 + $0x68] sm:$0xff]
      %v312 = vld [vmem:[%s1 + $0x70] sm:$0xff]
      %v313 = vld [vmem:[%s1 + $0x78] sm:$0xff]
      %v314 = vld [vmem:[%s1 + $0x80] sm:$0xff]
      %v315 = vld [vmem:[%s1 + $0x88] sm:$0xff]
      %v316 = vld [vmem:[%s1 + $0x90] sm:$0xff]
      %v317 = vld [vmem:[%s1 + $0x98] sm:$0xff]
      %v318 = vld [vmem:[%s1 + $0xa0] sm:$0xff]
      %v319 = vld [vmem:[%s1 + $0xa8] sm:$0xff]
      %v320 = vld [vmem:[%s1 + $0xb0] sm:$0xff]
      %v321 = vld [vmem:[%s1 + $0xb8] sm:$0xff]
      %v322 = vld [vmem:[%s1 + $0xc0] sm:$0xff]
      %v323 = vld [vmem:[%s1 + $0xc8] sm:$0xff]
      %v324 = vld [vmem:[%s1 + $0xd0] sm:$0xff]
      %v325 = vld [vmem:[%s1 + $0xd8] sm:$0xff]
      %vm326 = vcmask 785408
      %v328 = vsel %vm326, %v251, 0
      %v331 = vsel %vm326, %v253, 0
      %v334 = vsel %vm326, %v255, 0
      %v337 = vsel %vm326, %v257, 0
      %v340 = vsel %vm326, %v259, 0
      %v343 = vsel %vm326, %v261, 0
      %v346 = vsel %vm326, %v263, 0
      %v349 = vsel %vm326, %v265, 0
      %v352 = vsel %vm326, %v267, 0
      %v355 = vsel %vm326, %v269, 0
      %v358 = vsel %vm326, %v271, 0
      %v361 = vsel %vm326, %v273, 0
      %v364 = vsel %vm326, %v275, 0
      %v367 = vsel %vm326, %v277, 0
      %v370 = vsel %vm326, %v279, 0
      %v373 = vsel %vm326, %v281, 0
      %v376 = vsel %vm326, %v283, 0
      %v379 = vsel %vm326, %v285, 0
      %v382 = vsel %vm326, %v287, 0
      %v385 = vsel %vm326, %v289, 0
      %v388 = vsel %vm326, %v291, 0
      %v391 = vsel %vm326, %v293, 0
      %v394 = vsel %vm326, %v295, 0
      %v397 = vsel %vm326, %v297, 0
      %399 = vmatprep.subr.mxu0 0.0
      %400 = vmatpush1.msra.mxu0 %v298
      %401 = vmatprep.subr.mxu0 0.0
      %402 = vmatpush1.msra.mxu0 %v299
      %403 = vmatprep.subr.mxu0 0.0
      %404 = vmatpush1.msra.mxu0 %v300
      %405 = vmatprep.subr.mxu0 0.0
      %406 = vmatpush1.msra.mxu0 %v301
      %407 = vmatprep.subr.mxu0 0.0
      %408 = vmatpush1.msra.mxu0 %v302
      %409 = vmatprep.subr.mxu0 0.0
      %410 = vmatpush1.msra.mxu0 %v303
      %411 = vmatprep.subr.mxu0 0.0
      %412 = vmatpush1.msra.mxu0 %v304
      %413 = vmatprep.subr.mxu0 0.0
      %414 = vmatpush1.msra.mxu0 %v305
      %415 = vmatprep.subr.mxu0 0.0
      %416 = vmatpush1.msra.mxu0 %v306
      %417 = vmatprep.subr.mxu0 0.0
      %418 = vmatpush1.msra.mxu0 %v307
      %419 = vmatprep.subr.mxu0 0.0
      %420 = vmatpush1.msra.mxu0 %v308
      %421 = vmatprep.subr.mxu0 0.0
      %422 = vmatpush1.msra.mxu0 %v309
      %423 = vmatprep.subr.mxu0 0.0
      %424 = vmatpush1.msra.mxu0 %v310
      %425 = vmatprep.subr.mxu0 0.0
      %426 = vmatpush1.msra.mxu0 %v311
      %427 = vmatprep.subr.mxu0 0.0
      %428 = vmatpush1.msra.mxu0 %v312
      %429 = vmatprep.subr.mxu0 0.0
      %430 = vmatpush1.msra.mxu0 %v313
      %431 = vmatprep.subr.mxu0 0.0
      %432 = vmatpush1.msra.mxu0 %v314
      %433 = vmatprep.subr.mxu0 0.0
      %434 = vmatpush1.msra.mxu0 %v315
      %435 = vmatprep.subr.mxu0 0.0
      %436 = vmatpush1.msra.mxu0 %v316
      %437 = vmatprep.subr.mxu0 0.0
      %438 = vmatpush1.msra.mxu0 %v317
      %439 = vmatprep.subr.mxu0 0.0
      %440 = vmatpush1.msra.mxu0 %v318
      %441 = vmatprep.subr.mxu0 0.0
      %442 = vmatpush1.msra.mxu0 %v319
      %443 = vmatprep.subr.mxu0 0.0
      %444 = vmatpush1.msra.mxu0 %v320
      %445 = vmatprep.subr.mxu0 0.0
      %446 = vmatpush1.msra.mxu0 %v321
      %447 = vmatprep.subr.mxu0 0.0
      %448 = vmatpush1.msra.mxu0 %v322
      %449 = vmatprep.subr.mxu0 0.0
      %450 = vmatpush1.msra.mxu0 %v323
      %451 = vmatprep.subr.mxu0 0.0
      %452 = vmatpush1.msra.mxu0 %v324
      %453 = vmatprep.subr.mxu0 0.0
      %454 = vmatpush1.msra.mxu0 %v325
      %455 = vmatprep.subr.mxu0 0.0
      %456 = vmatpush1.msra.mxu0 0.0
      %457 = vmatprep.subr.mxu0 0.0
      %458 = vmatpush1.msra.mxu0 0.0
      %459 = vmatprep.subr.mxu0 0.0
      %460 = vmatpush1.msra.mxu0 0.0
      %461 = vmatprep.subr.mxu0 0.0
      %462 = vmatpush1.msra.mxu0 0.0
      %463 = vmatprep.mubr.f32.mxu0 %v328
      %464 = vmatmul.mubr.f32.gmra.mrb[0].mxu0 %v250
      %v465 = vpop.f32.mrb[0].mxu0
      %v466 = vadd.f32 0.0, %v465
      %v467 = vpop.f32.mrb[0].mxu0
      %468 = vmatprep.mubr.f32.mxu0 %v331
      %469 = vmatmul.mubr.f32.gmra.mrb[0].mxu0 %v252
      %v470 = vpop.f32.mrb[0].mxu0
      %v471 = vadd.f32 0.0, %v470
      %v472 = vpop.f32.mrb[0].mxu0
      %473 = vmatprep.mubr.f32.mxu0 %v334
      %474 = vmatmul.mubr.f32.gmra.mrb[0].mxu0 %v254
      %v475 = vpop.f32.mrb[0].mxu0
      %v476 = vadd.f32 0.0, %v475
      %v477 = vpop.f32.mrb[0].mxu0
      %478 = vmatprep.mubr.f32.mxu0 %v337
      %479 = vmatmul.mubr.f32.gmra.mrb[0].mxu0 %v256
      %v480 = vpop.f32.mrb[0].mxu0
      %v481 = vadd.f32 0.0, %v480
      %v482 = vpop.f32.mrb[0].mxu0
      %483 = vmatprep.mubr.f32.mxu0 %v340
      %484 = vmatmul.mubr.f32.gmra.mrb[0].mxu0 %v258
      %v485 = vpop.f32.mrb[0].mxu0
      %v486 = vadd.f32 0.0, %v485
      %v487 = vpop.f32.mrb[0].mxu0
      %488 = vmatprep.mubr.f32.mxu0 %v343
      %489 = vmatmul.mubr.f32.gmra.mrb[0].mxu0 %v260
      %v490 = vpop.f32.mrb[0].mxu0
      %v491 = vadd.f32 0.0, %v490
      %v492 = vpop.f32.mrb[0].mxu0
      %493 = vmatprep.mubr.f32.mxu0 %v346
      %494 = vmatmul.mubr.f32.gmra.mrb[0].mxu0 %v262
      %v495 = vpop.f32.mrb[0].mxu0
      %v496 = vadd.f32 0.0, %v495
      %v497 = vpop.f32.mrb[0].mxu0
      %498 = vmatprep.mubr.f32.mxu0 %v349
      %499 = vmatmul.mubr.f32.gmra.mrb[0].mxu0 %v264
      %v500 = vpop.f32.mrb[0].mxu0
      %v501 = vadd.f32 0.0, %v500
      %v502 = vpop.f32.mrb[0].mxu0
      %503 = vmatprep.mubr.f32.mxu0 %v352
      %504 = vmatmul.mubr.f32.gmra.mrb[0].mxu0 %v266
      %v505 = vpop.f32.mrb[0].mxu0
      %v506 = vadd.f32 0.0, %v505
      %v507 = vpop.f32.mrb[0].mxu0
      %508 = vmatprep.mubr.f32.mxu0 %v355
      %509 = vmatmul.mubr.f32.gmra.mrb[0].mxu0 %v268
      %v510 = vpop.f32.mrb[0].mxu0
      %v511 = vadd.f32 0.0, %v510
      %v512 = vpop.f32.mrb[0].mxu0
      %513 = vmatprep.mubr.f32.mxu0 %v358
      %514 = vmatmul.mubr.f32.gmra.mrb[0].mxu0 %v270
      %v515 = vpop.f32.mrb[0].mxu0
      %v516 = vadd.f32 0.0, %v515
      %v517 = vpop.f32.mrb[0].mxu0
      %518 = vmatprep.mubr.f32.mxu0 %v361
      %519 = vmatmul.mubr.f32.gmra.mrb[0].mxu0 %v272
      %v520 = vpop.f32.mrb[0].mxu0
      %v521 = vadd.f32 0.0, %v520
      %v522 = vpop.f32.mrb[0].mxu0
      %523 = vmatprep.mubr.f32.mxu0 %v364
      %524 = vmatmul.mubr.f32.gmra.mrb[0].mxu0 %v274
      %v525 = vpop.f32.mrb[0].mxu0
      %v526 = vadd.f32 0.0, %v525
      %v527 = vpop.f32.mrb[0].mxu0
      %528 = vmatprep.mubr.f32.mxu0 %v367
      %529 = vmatmul.mubr.f32.gmra.mrb[0].mxu0 %v276
      %v530 = vpop.f32.mrb[0].mxu0
      %v531 = vadd.f32 0.0, %v530
      %v532 = vpop.f32.mrb[0].mxu0
      %533 = vmatprep.mubr.f32.mxu0 %v370
      %534 = vmatmul.mubr.f32.gmra.mrb[0].mxu0 %v278
      %v535 = vpop.f32.mrb[0].mxu0
      %v536 = vadd.f32 0.0, %v535
      %v537 = vpop.f32.mrb[0].mxu0
      %538 = vmatprep.mubr.f32.mxu0 %v373
      %539 = vmatmul.mubr.f32.gmra.mrb[0].mxu0 %v280
      %v540 = vpop.f32.mrb[0].mxu0
      %v541 = vadd.f32 0.0, %v540
      %v542 = vpop.f32.mrb[0].mxu0
      %543 = vmatprep.mubr.f32.mxu0 %v376
      %544 = vmatmul.mubr.f32.gmra.mrb[0].mxu0 %v282
      %v545 = vpop.f32.mrb[0].mxu0
      %v546 = vadd.f32 0.0, %v545
      %v547 = vpop.f32.mrb[0].mxu0
      %548 = vmatprep.mubr.f32.mxu0 %v379
      %549 = vmatmul.mubr.f32.gmra.mrb[0].mxu0 %v284
      %v550 = vpop.f32.mrb[0].mxu0
      %v551 = vadd.f32 0.0, %v550
      %v552 = vpop.f32.mrb[0].mxu0
      %553 = vmatprep.mubr.f32.mxu0 %v382
      %554 = vmatmul.mubr.f32.gmra.mrb[0].mxu0 %v286
      %v555 = vpop.f32.mrb[0].mxu0
      %v556 = vadd.f32 0.0, %v555
      %v557 = vpop.f32.mrb[0].mxu0
      %558 = vmatprep.mubr.f32.mxu0 %v385
      %559 = vmatmul.mubr.f32.gmra.mrb[0].mxu0 %v288
      %v560 = vpop.f32.mrb[0].mxu0
      %v561 = vadd.f32 0.0, %v560
      %v562 = vpop.f32.mrb[0].mxu0
      %563 = vmatprep.mubr.f32.mxu0 %v388
      %564 = vmatmul.mubr.f32.gmra.mrb[0].mxu0 %v290
      %v565 = vpop.f32.mrb[0].mxu0
      %v566 = vadd.f32 0.0, %v565
      %v567 = vpop.f32.mrb[0].mxu0
      %568 = vmatprep.mubr.f32.mxu0 %v391
      %569 = vmatmul.mubr.f32.gmra.mrb[0].mxu0 %v292
      %v570 = vpop.f32.mrb[0].mxu0
      %v571 = vadd.f32 0.0, %v570
      %v572 = vpop.f32.mrb[0].mxu0
      %573 = vmatprep.mubr.f32.mxu0 %v394
      %574 = vmatmul.mubr.f32.gmra.mrb[0].mxu0 %v294
      %v575 = vpop.f32.mrb[0].mxu0
      %v576 = vadd.f32 0.0, %v575
      %v577 = vpop.f32.mrb[0].mxu0
      %578 = vmatprep.mubr.f32.mxu0 %v397
      %579 = vmatmul.mubr.f32.gmra.mrb[0].mxu0 %v296
      %v580 = vpop.f32.mrb[0].mxu0
      %v581 = vadd.f32 0.0, %v580
      %v582 = vpop.f32.mrb[0].mxu0
      %583 = vdwg.mxu0
      %v584 = vmax.f32 %v466, 0.0
      %v585 = vmax.f32 %v471, 0.0
      %v586 = vmax.f32 %v476, 0.0
      %v587 = vmax.f32 %v481, 0.0
      %v588 = vmax.f32 %v486, 0.0
      %v589 = vmax.f32 %v491, 0.0
      %v590 = vmax.f32 %v496, 0.0
      %v591 = vmax.f32 %v501, 0.0
      %v592 = vmax.f32 %v506, 0.0
      %v593 = vmax.f32 %v511, 0.0
      %v594 = vmax.f32 %v516, 0.0
      %v595 = vmax.f32 %v521, 0.0
      %v596 = vmax.f32 %v526, 0.0
      %v597 = vmax.f32 %v531, 0.0
      %v598 = vmax.f32 %v536, 0.0
      %v599 = vmax.f32 %v541, 0.0
      %v600 = vmax.f32 %v546, 0.0
      %v601 = vmax.f32 %v551, 0.0
      %v602 = vmax.f32 %v556, 0.0
      %v603 = vmax.f32 %v561, 0.0
      %v604 = vmax.f32 %v566, 0.0
      %v605 = vmax.f32 %v571, 0.0
      %v606 = vmax.f32 %v576, 0.0
      %v607 = vmax.f32 %v581, 0.0
      %v608 = vld [vmem:[%s2] sm:$0xff]
      %v609 = vld [vmem:[%s2 + $0x8] sm:$0xff]
      %v610 = vld [vmem:[%s2 + $0x10] sm:$0xff]
      %v611 = vld [vmem:[%s2 + $0x18] sm:$0xff]
      %v612 = vld [vmem:[%s2 + $0x20] sm:$0xff]
      %v613 = vld [vmem:[%s2 + $0x28] sm:$0xff]
      %v614 = vld [vmem:[%s2 + $0x30] sm:$0xff]
      %v615 = vld [vmem:[%s2 + $0x38] sm:$0xff]
      %v616 = vld [vmem:[%s2 + $0x40] sm:$0xff]
      %v617 = vld [vmem:[%s2 + $0x48] sm:$0xff]
      %v618 = vld [vmem:[%s2 + $0x50] sm:$0xff]
      %v619 = vld [vmem:[%s2 + $0x58] sm:$0xff]
      %v620 = vld [vmem:[%s2 + $0x60] sm:$0xff]
      %v621 = vld [vmem:[%s2 + $0x68] sm:$0xff]
      %v622 = vld [vmem:[%s2 + $0x70] sm:$0xff]
      %v623 = vld [vmem:[%s2 + $0x78] sm:$0xff]
      %v624 = vld [vmem:[%s2 + $0x80] sm:$0xff]
      %v625 = vld [vmem:[%s2 + $0x88] sm:$0xff]
      %v626 = vld [vmem:[%s2 + $0x90] sm:$0xff]
      %v627 = vld [vmem:[%s2 + $0x98] sm:$0xff]
      %v628 = vld [vmem:[%s2 + $0xa0] sm:$0xff]
      %v629 = vld [vmem:[%s2 + $0xa8] sm:$0xff]
      %v630 = vld [vmem:[%s2 + $0xb0] sm:$0xff]
      %v631 = vld [vmem:[%s2 + $0xb8] sm:$0xff]
      %v632 = vld [vmem:[%s2 + $0xc0] sm:$0xff]
      %v633 = vld [vmem:[%s2 + $0xc8] sm:$0xff]
      %v634 = vld [vmem:[%s2 + $0xd0] sm:$0xff]
      %v635 = vld [vmem:[%s2 + $0xd8] sm:$0xff]
      %v636 = vld [vmem:[%s2 + $0xe0] sm:$0xff]
      %v637 = vld [vmem:[%s2 + $0xe8] sm:$0xff]
      %v638 = vld [vmem:[%s2 + $0xf0] sm:$0xff]
      %v639 = vld [vmem:[%s2 + $0xf8] sm:$0xff]
      %v640 = vld [vmem:[%s2 + $0x100] sm:$0xff]
      %v641 = vld [vmem:[%s2 + $0x108] sm:$0xff]
      %v642 = vld [vmem:[%s2 + $0x110] sm:$0xff]
      %v643 = vld [vmem:[%s2 + $0x118] sm:$0xff]
      %v644 = vld [vmem:[%s2 + $0x120] sm:$0xff]
      %v645 = vld [vmem:[%s2 + $0x128] sm:$0xff]
      %v646 = vld [vmem:[%s2 + $0x130] sm:$0xff]
      %v647 = vld [vmem:[%s2 + $0x138] sm:$0xff]
      %v648 = vld [vmem:[%s2 + $0x140] sm:$0xff]
      %v649 = vld [vmem:[%s2 + $0x148] sm:$0xff]
      %v650 = vld [vmem:[%s2 + $0x150] sm:$0xff]
      %v651 = vld [vmem:[%s2 + $0x158] sm:$0xff]
      %v652 = vld [vmem:[%s2 + $0x160] sm:$0xff]
      %v653 = vld [vmem:[%s2 + $0x168] sm:$0xff]
      %v654 = vld [vmem:[%s2 + $0x170] sm:$0xff]
      %v655 = vld [vmem:[%s2 + $0x178] sm:$0xff]
      %v656 = vld [vmem:[%s3] sm:$0x1]
      %v658 = vlaneseq
      %v659 = vshrl.u32 %v658, 7
      %v660 = vsub.s32 0, %v659
      %v661 = vrot.slane %v656, %v660
      %663 = vmatprep.subr.mxu0 0.0
      %664 = vmatpush1.msra.mxu0 %v608
      %665 = vmatprep.subr.mxu0 0.0
      %666 = vmatpush1.msra.mxu0 %v609
      %667 = vmatprep.subr.mxu0 0.0
      %668 = vmatpush1.msra.mxu0 %v610
      %669 = vmatprep.subr.mxu0 0.0
      %670 = vmatpush1.msra.mxu0 %v611
      %671 = vmatprep.subr.mxu0 0.0
      %672 = vmatpush1.msra.mxu0 %v612
      %673 = vmatprep.subr.mxu0 0.0
      %674 = vmatpush1.msra.mxu0 %v613
      %675 = vmatprep.subr.mxu0 0.0
      %676 = vmatpush1.msra.mxu0 %v614
      %677 = vmatprep.subr.mxu0 0.0
      %678 = vmatpush1.msra.mxu0 %v615
      %679 = vmatprep.subr.mxu0 0.0
      %680 = vmatpush1.msra.mxu0 %v616
      %681 = vmatprep.subr.mxu0 0.0
      %682 = vmatpush1.msra.mxu0 %v617
      %683 = vmatprep.subr.mxu0 0.0
      %684 = vmatpush1.msra.mxu0 %v618
      %685 = vmatprep.subr.mxu0 0.0
      %686 = vmatpush1.msra.mxu0 %v619
      %687 = vmatprep.subr.mxu0 0.0
      %688 = vmatpush1.msra.mxu0 %v620
      %689 = vmatprep.subr.mxu0 0.0
      %690 = vmatpush1.msra.mxu0 %v621
      %691 = vmatprep.subr.mxu0 0.0
      %692 = vmatpush1.msra.mxu0 %v622
      %693 = vmatprep.subr.mxu0 0.0
      %694 = vmatpush1.msra.mxu0 %v623
      %695 = vmatprep.subr.mxu0 0.0
      %696 = vmatpush1.msra.mxu0 %v624
      %697 = vmatprep.subr.mxu0 0.0
      %698 = vmatpush1.msra.mxu0 %v625
      %699 = vmatprep.subr.mxu0 0.0
      %700 = vmatpush1.msra.mxu0 %v626
      %701 = vmatprep.subr.mxu0 0.0
      %702 = vmatpush1.msra.mxu0 %v627
      %703 = vmatprep.subr.mxu0 0.0
      %704 = vmatpush1.msra.mxu0 %v628
      %705 = vmatprep.subr.mxu0 0.0
      %706 = vmatpush1.msra.mxu0 %v629
      %707 = vmatprep.subr.mxu0 0.0
      %708 = vmatpush1.msra.mxu0 %v630
      %709 = vmatprep.subr.mxu0 0.0
      %710 = vmatpush1.msra.mxu0 %v631
      %711 = vmatprep.subr.mxu0 0.0
      %712 = vmatpush1.msra.mxu0 %v632
      %713 = vmatprep.subr.mxu0 0.0
      %714 = vmatpush1.msra.mxu0 %v633
      %715 = vmatprep.subr.mxu0 0.0
      %716 = vmatpush1.msra.mxu0 %v634
      %717 = vmatprep.subr.mxu0 0.0
      %718 = vmatpush1.msra.mxu0 %v635
      %719 = vmatprep.subr.mxu0 0.0
      %720 = vmatpush1.msra.mxu0 %v636
      %721 = vmatprep.subr.mxu0 0.0
      %722 = vmatpush1.msra.mxu0 %v637
      %723 = vmatprep.subr.mxu0 0.0
      %724 = vmatpush1.msra.mxu0 %v638
      %725 = vmatprep.subr.mxu0 0.0
      %726 = vmatpush1.msra.mxu0 %v639
      %727 = vmatprep.mubr.f32.mxu0 %v592
      %728 = vmatmul.mubr.f32.gmra.mrb[0].mxu0 %v584
      %v729 = vpop.f32.mrb[0].mxu0
      %v730 = vadd.f32 %v661, %v729
      %v731 = vpop.f32.mrb[0].mxu0
      %732 = vmatprep.mubr.f32.mxu0 %v593
      %733 = vmatmul.mubr.f32.gmra.mrb[0].mxu0 %v585
      %v734 = vpop.f32.mrb[0].mxu0
      %v735 = vadd.f32 %v661, %v734
      %v736 = vpop.f32.mrb[0].mxu0
      %737 = vmatprep.mubr.f32.mxu0 %v594
      %738 = vmatmul.mubr.f32.gmra.mrb[0].mxu0 %v586
      %v739 = vpop.f32.mrb[0].mxu0
      %v740 = vadd.f32 %v661, %v739
      %v741 = vpop.f32.mrb[0].mxu0
      %742 = vmatprep.mubr.f32.mxu0 %v595
      %743 = vmatmul.mubr.f32.gmra.mrb[0].mxu0 %v587
      %v744 = vpop.f32.mrb[0].mxu0
      %v745 = vadd.f32 %v661, %v744
      %v746 = vpop.f32.mrb[0].mxu0
      %747 = vmatprep.mubr.f32.mxu0 %v596
      %748 = vmatmul.mubr.f32.gmra.mrb[0].mxu0 %v588
      %v749 = vpop.f32.mrb[0].mxu0
      %v750 = vadd.f32 %v661, %v749
      %v751 = vpop.f32.mrb[0].mxu0
      %752 = vmatprep.mubr.f32.mxu0 %v597
      %753 = vmatmul.mubr.f32.gmra.mrb[0].mxu0 %v589
      %v754 = vpop.f32.mrb[0].mxu0
      %v755 = vadd.f32 %v661, %v754
      %v756 = vpop.f32.mrb[0].mxu0
      %757 = vmatprep.mubr.f32.mxu0 %v598
      %758 = vmatmul.mubr.f32.gmra.mrb[0].mxu0 %v590
      %v759 = vpop.f32.mrb[0].mxu0
      %v760 = vadd.f32 %v661, %v759
      %v761 = vpop.f32.mrb[0].mxu0
      %762 = vmatprep.mubr.f32.mxu0 %v599
      %763 = vmatmul.mubr.f32.gmra.mrb[0].mxu0 %v591
      %v764 = vpop.f32.mrb[0].mxu0
      %v765 = vadd.f32 %v661, %v764
      %v766 = vpop.f32.mrb[0].mxu0
      %767 = vdwg.mxu0
      %768 = vmatprep.subr.mxu0 0.0
      %769 = vmatpush1.msra.mxu0 %v640
      %770 = vmatprep.subr.mxu0 0.0
      %771 = vmatpush1.msra.mxu0 %v641
      %772 = vmatprep.subr.mxu0 0.0
      %773 = vmatpush1.msra.mxu0 %v642
      %774 = vmatprep.subr.mxu0 0.0
      %775 = vmatpush1.msra.mxu0 %v643
      %776 = vmatprep.subr.mxu0 0.0
      %777 = vmatpush1.msra.mxu0 %v644
      %778 = vmatprep.subr.mxu0 0.0
      %779 = vmatpush1.msra.mxu0 %v645
      %780 = vmatprep.subr.mxu0 0.0
      %781 = vmatpush1.msra.mxu0 %v646
      %782 = vmatprep.subr.mxu0 0.0
      %783 = vmatpush1.msra.mxu0 %v647
      %784 = vmatprep.subr.mxu0 0.0
      %785 = vmatpush1.msra.mxu0 %v648
      %786 = vmatprep.subr.mxu0 0.0
      %787 = vmatpush1.msra.mxu0 %v649
      %788 = vmatprep.subr.mxu0 0.0
      %789 = vmatpush1.msra.mxu0 %v650
      %790 = vmatprep.subr.mxu0 0.0
      %791 = vmatpush1.msra.mxu0 %v651
      %792 = vmatprep.subr.mxu0 0.0
      %793 = vmatpush1.msra.mxu0 %v652
      %794 = vmatprep.subr.mxu0 0.0
      %795 = vmatpush1.msra.mxu0 %v653
      %796 = vmatprep.subr.mxu0 0.0
      %797 = vmatpush1.msra.mxu0 %v654
      %798 = vmatprep.subr.mxu0 0.0
      %799 = vmatpush1.msra.mxu0 %v655
      %800 = vmatprep.subr.mxu0 0.0
      %801 = vmatpush1.msra.mxu0 0.0
      %802 = vmatprep.subr.mxu0 0.0
      %803 = vmatpush1.msra.mxu0 0.0
      %804 = vmatprep.subr.mxu0 0.0
      %805 = vmatpush1.msra.mxu0 0.0
      %806 = vmatprep.subr.mxu0 0.0
      %807 = vmatpush1.msra.mxu0 0.0
      %808 = vmatprep.subr.mxu0 0.0
      %809 = vmatpush1.msra.mxu0 0.0
      %810 = vmatprep.subr.mxu0 0.0
      %811 = vmatpush1.msra.mxu0 0.0
      %812 = vmatprep.subr.mxu0 0.0
      %813 = vmatpush1.msra.mxu0 0.0
      %814 = vmatprep.subr.mxu0 0.0
      %815 = vmatpush1.msra.mxu0 0.0
      %816 = vmatprep.subr.mxu0 0.0
      %817 = vmatpush1.msra.mxu0 0.0
      %818 = vmatprep.subr.mxu0 0.0
      %819 = vmatpush1.msra.mxu0 0.0
      %820 = vmatprep.subr.mxu0 0.0
      %821 = vmatpush1.msra.mxu0 0.0
      %822 = vmatprep.subr.mxu0 0.0
      %823 = vmatpush1.msra.mxu0 0.0
      %824 = vmatprep.subr.mxu0 0.0
      %825 = vmatpush1.msra.mxu0 0.0
      %826 = vmatprep.subr.mxu0 0.0
      %827 = vmatpush1.msra.mxu0 0.0
      %828 = vmatprep.subr.mxu0 0.0
      %829 = vmatpush1.msra.mxu0 0.0
      %830 = vmatprep.subr.mxu0 0.0
      %831 = vmatpush1.msra.mxu0 0.0
      %832 = vmatprep.mubr.f32.mxu0 0.0
      %833 = vmatmul.mubr.f32.gmra.mrb[0].mxu0 %v600
      %v834 = vpop.f32.mrb[0].mxu0
      %v835 = vadd.f32 %v730, %v834
      %v836 = vpop.f32.mrb[0].mxu0
      %837 = vmatprep.mubr.f32.mxu0 0.0
      %838 = vmatmul.mubr.f32.gmra.mrb[0].mxu0 %v601
      %v839 = vpop.f32.mrb[0].mxu0
      %v840 = vadd.f32 %v735, %v839
      %v841 = vpop.f32.mrb[0].mxu0
      %842 = vmatprep.mubr.f32.mxu0 0.0
      %843 = vmatmul.mubr.f32.gmra.mrb[0].mxu0 %v602
      %v844 = vpop.f32.mrb[0].mxu0
      %v845 = vadd.f32 %v740, %v844
      %v846 = vpop.f32.mrb[0].mxu0
      %847 = vmatprep.mubr.f32.mxu0 0.0
      %848 = vmatmul.mubr.f32.gmra.mrb[0].mxu0 %v603
      %v849 = vpop.f32.mrb[0].mxu0
      %v850 = vadd.f32 %v745, %v849
      %v851 = vpop.f32.mrb[0].mxu0
      %852 = vmatprep.mubr.f32.mxu0 0.0
      %853 = vmatmul.mubr.f32.gmra.mrb[0].mxu0 %v604
      %v854 = vpop.f32.mrb[0].mxu0
      %v855 = vadd.f32 %v750, %v854
      %v856 = vpop.f32.mrb[0].mxu0
      %857 = vmatprep.mubr.f32.mxu0 0.0
      %858 = vmatmul.mubr.f32.gmra.mrb[0].mxu0 %v605
      %v859 = vpop.f32.mrb[0].mxu0
      %v860 = vadd.f32 %v755, %v859
      %v861 = vpop.f32.mrb[0].mxu0
      %862 = vmatprep.mubr.f32.mxu0 0.0
      %863 = vmatmul.mubr.f32.gmra.mrb[0].mxu0 %v606
      %v864 = vpop.f32.mrb[0].mxu0
      %v865 = vadd.f32 %v760, %v864
      %v866 = vpop.f32.mrb[0].mxu0
      %867 = vmatprep.mubr.f32.mxu0 0.0
      %868 = vmatmul.mubr.f32.gmra.mrb[0].mxu0 %v607
      %v869 = vpop.f32.mrb[0].mxu0
      %v870 = vadd.f32 %v765, %v869
      %v871 = vpop.f32.mrb[0].mxu0
      %872 = vdwg.mxu0
      %v873 = vmax.f32 %v835, 0.0
      %v874 = vmax.f32 %v840, 0.0
      %v875 = vmax.f32 %v845, 0.0
      %v876 = vmax.f32 %v850, 0.0
      %v877 = vmax.f32 %v855, 0.0
      %v878 = vmax.f32 %v860, 0.0
      %v879 = vmax.f32 %v865, 0.0
      %v880 = vmax.f32 %v870, 0.0
      %v881 = vld [vmem:[%s4] sm:$0xff]
      %v882 = vld [vmem:[%s4 + $0x8] sm:$0xff]
      %v883 = vld [vmem:[%s4 + $0x10] sm:$0xff]
      %v884 = vld [vmem:[%s4 + $0x18] sm:$0xff]
      %v885 = vld [vmem:[%s4 + $0x20] sm:$0xff]
      %v886 = vld [vmem:[%s4 + $0x28] sm:$0xff]
      %v887 = vld [vmem:[%s4 + $0x30] sm:$0xff]
      %v888 = vld [vmem:[%s4 + $0x38] sm:$0xff]
      %v889 = vld [vmem:[%s4 + $0x40] sm:$0xff]
      %v890 = vld [vmem:[%s4 + $0x48] sm:$0xff]
      %v891 = vld [vmem:[%s4 + $0x50] sm:$0xff]
      %v892 = vld [vmem:[%s4 + $0x58] sm:$0xff]
      %v893 = vld [vmem:[%s4 + $0x60] sm:$0xff]
      %v894 = vld [vmem:[%s4 + $0x68] sm:$0xff]
      %v895 = vld [vmem:[%s4 + $0x70] sm:$0xff]
      %v896 = vld [vmem:[%s4 + $0x78] sm:$0xff]
      %v897 = vld [vmem:[%s4 + $0x80] sm:$0xff]
      %v898 = vld [vmem:[%s4 + $0x88] sm:$0xff]
      %v899 = vld [vmem:[%s4 + $0x90] sm:$0xff]
      %v900 = vld [vmem:[%s4 + $0x98] sm:$0xff]
      %v901 = vld [vmem:[%s4 + $0xa0] sm:$0xff]
      %v902 = vld [vmem:[%s4 + $0xa8] sm:$0xff]
      %v903 = vld [vmem:[%s4 + $0xb0] sm:$0xff]
      %v904 = vld [vmem:[%s4 + $0xb8] sm:$0xff]
      %v905 = vld [vmem:[%s4 + $0xc0] sm:$0xff]
      %v906 = vld [vmem:[%s4 + $0xc8] sm:$0xff]
      %v907 = vld [vmem:[%s4 + $0xd0] sm:$0xff]
      %v908 = vld [vmem:[%s4 + $0xd8] sm:$0xff]
      %v909 = vld [vmem:[%s4 + $0xe0] sm:$0xff]
      %v910 = vld [vmem:[%s4 + $0xe8] sm:$0xff]
      %v911 = vld [vmem:[%s4 + $0xf0] sm:$0xff]
      %v912 = vld [vmem:[%s4 + $0xf8] sm:$0xff]
      %v913 = vld [vmem:[%s4 + $0x100] sm:$0xff]
      %v914 = vld [vmem:[%s4 + $0x108] sm:$0xff]
      %v915 = vld [vmem:[%s4 + $0x110] sm:$0xff]
      %v916 = vld [vmem:[%s4 + $0x118] sm:$0xff]
      %v917 = vld [vmem:[%s4 + $0x120] sm:$0xff]
      %v918 = vld [vmem:[%s4 + $0x128] sm:$0xff]
      %v919 = vld [vmem:[%s4 + $0x130] sm:$0xff]
      %v920 = vld [vmem:[%s4 + $0x138] sm:$0xff]
      %v921 = vld [vmem:[%s4 + $0x140] sm:$0xff]
      %v922 = vld [vmem:[%s4 + $0x148] sm:$0xff]
      %v923 = vld [vmem:[%s4 + $0x150] sm:$0xff]
      %v924 = vld [vmem:[%s4 + $0x158] sm:$0xff]
      %v925 = vld [vmem:[%s4 + $0x160] sm:$0xff]
      %v926 = vld [vmem:[%s4 + $0x168] sm:$0xff]
      %v927 = vld [vmem:[%s4 + $0x170] sm:$0xff]
      %v928 = vld [vmem:[%s4 + $0x178] sm:$0xff]
      %v929 = vld [vmem:[%s4 + $0x180] sm:$0xff]
      %v930 = vld [vmem:[%s4 + $0x188] sm:$0xff]
      %v931 = vld [vmem:[%s4 + $0x190] sm:$0xff]
      %v932 = vld [vmem:[%s4 + $0x198] sm:$0xff]
      %v933 = vld [vmem:[%s4 + $0x1a0] sm:$0xff]
      %v934 = vld [vmem:[%s4 + $0x1a8] sm:$0xff]
      %v935 = vld [vmem:[%s4 + $0x1b0] sm:$0xff]
      %v936 = vld [vmem:[%s4 + $0x1b8] sm:$0xff]
      %v937 = vld [vmem:[%s4 + $0x1c0] sm:$0xff]
      %v938 = vld [vmem:[%s4 + $0x1c8] sm:$0xff]
      %v939 = vld [vmem:[%s4 + $0x1d0] sm:$0xff]
      %v940 = vld [vmem:[%s4 + $0x1d8] sm:$0xff]
      %v941 = vld [vmem:[%s4 + $0x1e0] sm:$0xff]
      %v942 = vld [vmem:[%s4 + $0x1e8] sm:$0xff]
      %v943 = vld [vmem:[%s4 + $0x1f0] sm:$0xff]
      %v944 = vld [vmem:[%s4 + $0x1f8] sm:$0xff]
      %v945 = vld [vmem:[%s4 + $0x200] sm:$0xff]
      %v946 = vld [vmem:[%s4 + $0x208] sm:$0xff]
      %v947 = vld [vmem:[%s4 + $0x210] sm:$0xff]
      %v948 = vld [vmem:[%s4 + $0x218] sm:$0xff]
      %v949 = vld [vmem:[%s4 + $0x220] sm:$0xff]
      %v950 = vld [vmem:[%s4 + $0x228] sm:$0xff]
      %v951 = vld [vmem:[%s4 + $0x230] sm:$0xff]
      %v952 = vld [vmem:[%s4 + $0x238] sm:$0xff]
      %v953 = vld [vmem:[%s4 + $0x240] sm:$0xff]
      %v954 = vld [vmem:[%s4 + $0x248] sm:$0xff]
      %v955 = vld [vmem:[%s4 + $0x250] sm:$0xff]
      %v956 = vld [vmem:[%s4 + $0x258] sm:$0xff]
      %v957 = vld [vmem:[%s4 + $0x260] sm:$0xff]
      %v958 = vld [vmem:[%s4 + $0x268] sm:$0xff]
      %v959 = vld [vmem:[%s4 + $0x270] sm:$0xff]
      %v960 = vld [vmem:[%s4 + $0x278] sm:$0xff]
      %v961 = vld [vmem:[%s4 + $0x280] sm:$0xff]
      %v962 = vld [vmem:[%s4 + $0x288] sm:$0xff]
      %v963 = vld [vmem:[%s4 + $0x290] sm:$0xff]
      %v964 = vld [vmem:[%s4 + $0x298] sm:$0xff]
      %v965 = vld [vmem:[%s4 + $0x2a0] sm:$0xff]
      %v966 = vld [vmem:[%s4 + $0x2a8] sm:$0xff]
      %v967 = vld [vmem:[%s4 + $0x2b0] sm:$0xff]
      %v968 = vld [vmem:[%s4 + $0x2b8] sm:$0xff]
      %v969 = vld [vmem:[%s4 + $0x2c0] sm:$0xff]
      %v970 = vld [vmem:[%s4 + $0x2c8] sm:$0xff]
      %v971 = vld [vmem:[%s4 + $0x2d0] sm:$0xff]
      %v972 = vld [vmem:[%s4 + $0x2d8] sm:$0xff]
      %v973 = vld [vmem:[%s4 + $0x2e0] sm:$0xff]
      %v974 = vld [vmem:[%s4 + $0x2e8] sm:$0xff]
      %v975 = vld [vmem:[%s4 + $0x2f0] sm:$0xff]
      %v976 = vld [vmem:[%s4 + $0x2f8] sm:$0xff]
      %v977 = vld [vmem:[%s4 + $0x300] sm:$0xff]
      %v978 = vld [vmem:[%s4 + $0x308] sm:$0xff]
      %v979 = vld [vmem:[%s4 + $0x310] sm:$0xff]
      %v980 = vld [vmem:[%s4 + $0x318] sm:$0xff]
      %v981 = vld [vmem:[%s4 + $0x320] sm:$0xff]
      %v982 = vld [vmem:[%s4 + $0x328] sm:$0xff]
      %v983 = vld [vmem:[%s4 + $0x330] sm:$0xff]
      %v984 = vld [vmem:[%s4 + $0x338] sm:$0xff]
      %v985 = vld [vmem:[%s4 + $0x340] sm:$0xff]
      %v986 = vld [vmem:[%s4 + $0x348] sm:$0xff]
      %v987 = vld [vmem:[%s4 + $0x350] sm:$0xff]
      %v988 = vld [vmem:[%s4 + $0x358] sm:$0xff]
      %v989 = vld [vmem:[%s4 + $0x360] sm:$0xff]
      %v990 = vld [vmem:[%s4 + $0x368] sm:$0xff]
      %v991 = vld [vmem:[%s4 + $0x370] sm:$0xff]
      %v992 = vld [vmem:[%s4 + $0x378] sm:$0xff]
      %v993 = vld [vmem:[%s4 + $0x380] sm:$0xff]
      %v994 = vld [vmem:[%s4 + $0x388] sm:$0xff]
      %v995 = vld [vmem:[%s4 + $0x390] sm:$0xff]
      %v996 = vld [vmem:[%s4 + $0x398] sm:$0xff]
      %v997 = vld [vmem:[%s4 + $0x3a0] sm:$0xff]
      %v998 = vld [vmem:[%s4 + $0x3a8] sm:$0xff]
      %v999 = vld [vmem:[%s4 + $0x3b0] sm:$0xff]
      %v1000 = vld [vmem:[%s4 + $0x3b8] sm:$0xff]
      %v1001 = vld [vmem:[%s4 + $0x3c0] sm:$0xff]
      %v1002 = vld [vmem:[%s4 + $0x3c8] sm:$0xff]
      %v1003 = vld [vmem:[%s4 + $0x3d0] sm:$0xff]
      %v1004 = vld [vmem:[%s4 + $0x3d8] sm:$0xff]
      %v1005 = vld [vmem:[%s4 + $0x3e0] sm:$0xff]
      %v1006 = vld [vmem:[%s4 + $0x3e8] sm:$0xff]
      %v1007 = vld [vmem:[%s4 + $0x3f0] sm:$0xff]
      %v1008 = vld [vmem:[%s4 + $0x3f8] sm:$0xff]
      %v1009 = vld [vmem:[%s5] sm:$0x1]
      %v1011 = vlaneseq
      %v1012 = vshrl.u32 %v1011, 7
      %v1013 = vsub.s32 0, %v1012
      %v1014 = vrot.slane %v1009, %v1013
      %1016 = vmatprep.subr.mxu0 0.0
      %1017 = vmatpush1.msra.mxu0 %v881
      %1018 = vmatprep.subr.mxu0 0.0
      %1019 = vmatpush1.msra.mxu0 %v882
      %1020 = vmatprep.subr.mxu0 0.0
      %1021 = vmatpush1.msra.mxu0 %v883
      %1022 = vmatprep.subr.mxu0 0.0
      %1023 = vmatpush1.msra.mxu0 %v884
      %1024 = vmatprep.subr.mxu0 0.0
      %1025 = vmatpush1.msra.mxu0 %v885
      %1026 = vmatprep.subr.mxu0 0.0
      %1027 = vmatpush1.msra.mxu0 %v886
      %1028 = vmatprep.subr.mxu0 0.0
      %1029 = vmatpush1.msra.mxu0 %v887
      %1030 = vmatprep.subr.mxu0 0.0
      %1031 = vmatpush1.msra.mxu0 %v888
      %1032 = vmatprep.subr.mxu0 0.0
      %1033 = vmatpush1.msra.mxu0 %v889
      %1034 = vmatprep.subr.mxu0 0.0
      %1035 = vmatpush1.msra.mxu0 %v890
      %1036 = vmatprep.subr.mxu0 0.0
      %1037 = vmatpush1.msra.mxu0 %v891
      %1038 = vmatprep.subr.mxu0 0.0
      %1039 = vmatpush1.msra.mxu0 %v892
      %1040 = vmatprep.subr.mxu0 0.0
      %1041 = vmatpush1.msra.mxu0 %v893
      %1042 = vmatprep.subr.mxu0 0.0
      %1043 = vmatpush1.msra.mxu0 %v894
      %1044 = vmatprep.subr.mxu0 0.0
      %1045 = vmatpush1.msra.mxu0 %v895
      %1046 = vmatprep.subr.mxu0 0.0
      %1047 = vmatpush1.msra.mxu0 %v896
      %1048 = vmatprep.subr.mxu0 0.0
      %1049 = vmatpush1.msra.mxu0 %v897
      %1050 = vmatprep.subr.mxu0 0.0
      %1051 = vmatpush1.msra.mxu0 %v898
      %1052 = vmatprep.subr.mxu0 0.0
      %1053 = vmatpush1.msra.mxu0 %v899
      %1054 = vmatprep.subr.mxu0 0.0
      %1055 = vmatpush1.msra.mxu0 %v900
      %1056 = vmatprep.subr.mxu0 0.0
      %1057 = vmatpush1.msra.mxu0 %v901
      %1058 = vmatprep.subr.mxu0 0.0
      %1059 = vmatpush1.msra.mxu0 %v902
      %1060 = vmatprep.subr.mxu0 0.0
      %1061 = vmatpush1.msra.mxu0 %v903
      %1062 = vmatprep.subr.mxu0 0.0
      %1063 = vmatpush1.msra.mxu0 %v904
      %1064 = vmatprep.subr.mxu0 0.0
      %1065 = vmatpush1.msra.mxu0 %v905
      %1066 = vmatprep.subr.mxu0 0.0
      %1067 = vmatpush1.msra.mxu0 %v906
      %1068 = vmatprep.subr.mxu0 0.0
      %1069 = vmatpush1.msra.mxu0 %v907
      %1070 = vmatprep.subr.mxu0 0.0
      %1071 = vmatpush1.msra.mxu0 %v908
      %1072 = vmatprep.subr.mxu0 0.0
      %1073 = vmatpush1.msra.mxu0 %v909
      %1074 = vmatprep.subr.mxu0 0.0
      %1075 = vmatpush1.msra.mxu0 %v910
      %1076 = vmatprep.subr.mxu0 0.0
      %1077 = vmatpush1.msra.mxu0 %v911
      %1078 = vmatprep.subr.mxu0 0.0
      %1079 = vmatpush1.msra.mxu0 %v912
      %1080 = vmatprep.mubr.f32.mxu0 %v874
      %1081 = vmatmul.mubr.f32.gmra.mrb[0].mxu0 %v873
      %v1082 = vpop.f32.mrb[0].mxu0
      %v1083 = vadd.f32 %v1014, %v1082
      %v1084 = vpop.f32.mrb[0].mxu0
      %1085 = vdwg.mxu0
      %1086 = vmatprep.subr.mxu0 0.0
      %1087 = vmatpush1.msra.mxu0 %v913
      %1088 = vmatprep.subr.mxu0 0.0
      %1089 = vmatpush1.msra.mxu0 %v914
      %1090 = vmatprep.subr.mxu0 0.0
      %1091 = vmatpush1.msra.mxu0 %v915
      %1092 = vmatprep.subr.mxu0 0.0
      %1093 = vmatpush1.msra.mxu0 %v916
      %1094 = vmatprep.subr.mxu0 0.0
      %1095 = vmatpush1.msra.mxu0 %v917
      %1096 = vmatprep.subr.mxu0 0.0
      %1097 = vmatpush1.msra.mxu0 %v918
      %1098 = vmatprep.subr.mxu0 0.0
      %1099 = vmatpush1.msra.mxu0 %v919
      %1100 = vmatprep.subr.mxu0 0.0
      %1101 = vmatpush1.msra.mxu0 %v920
      %1102 = vmatprep.subr.mxu0 0.0
      %1103 = vmatpush1.msra.mxu0 %v921
      %1104 = vmatprep.subr.mxu0 0.0
      %1105 = vmatpush1.msra.mxu0 %v922
      %1106 = vmatprep.subr.mxu0 0.0
      %1107 = vmatpush1.msra.mxu0 %v923
      %1108 = vmatprep.subr.mxu0 0.0
      %1109 = vmatpush1.msra.mxu0 %v924
      %1110 = vmatprep.subr.mxu0 0.0
      %1111 = vmatpush1.msra.mxu0 %v925
      %1112 = vmatprep.subr.mxu0 0.0
      %1113 = vmatpush1.msra.mxu0 %v926
      %1114 = vmatprep.subr.mxu0 0.0
      %1115 = vmatpush1.msra.mxu0 %v927
      %1116 = vmatprep.subr.mxu0 0.0
      %1117 = vmatpush1.msra.mxu0 %v928
      %1118 = vmatprep.subr.mxu0 0.0
      %1119 = vmatpush1.msra.mxu0 %v929
      %1120 = vmatprep.subr.mxu0 0.0
      %1121 = vmatpush1.msra.mxu0 %v930
      %1122 = vmatprep.subr.mxu0 0.0
      %1123 = vmatpush1.msra.mxu0 %v931
      %1124 = vmatprep.subr.mxu0 0.0
      %1125 = vmatpush1.msra.mxu0 %v932
      %1126 = vmatprep.subr.mxu0 0.0
      %1127 = vmatpush1.msra.mxu0 %v933
      %1128 = vmatprep.subr.mxu0 0.0
      %1129 = vmatpush1.msra.mxu0 %v934
      %1130 = vmatprep.subr.mxu0 0.0
      %1131 = vmatpush1.msra.mxu0 %v935
      %1132 = vmatprep.subr.mxu0 0.0
      %1133 = vmatpush1.msra.mxu0 %v936
      %1134 = vmatprep.subr.mxu0 0.0
      %1135 = vmatpush1.msra.mxu0 %v937
      %1136 = vmatprep.subr.mxu0 0.0
      %1137 = vmatpush1.msra.mxu0 %v938
      %1138 = vmatprep.subr.mxu0 0.0
      %1139 = vmatpush1.msra.mxu0 %v939
      %1140 = vmatprep.subr.mxu0 0.0
      %1141 = vmatpush1.msra.mxu0 %v940
      %1142 = vmatprep.subr.mxu0 0.0
      %1143 = vmatpush1.msra.mxu0 %v941
      %1144 = vmatprep.subr.mxu0 0.0
      %1145 = vmatpush1.msra.mxu0 %v942
      %1146 = vmatprep.subr.mxu0 0.0
      %1147 = vmatpush1.msra.mxu0 %v943
      %1148 = vmatprep.subr.mxu0 0.0
      %1149 = vmatpush1.msra.mxu0 %v944
      %1150 = vmatprep.mubr.f32.mxu0 %v876
      %1151 = vmatmul.mubr.f32.gmra.mrb[0].mxu0 %v875
      %v1152 = vpop.f32.mrb[0].mxu0
      %v1153 = vadd.f32 %v1083, %v1152
      %v1154 = vpop.f32.mrb[0].mxu0
      %1155 = vdwg.mxu0
      %1156 = vmatprep.subr.mxu0 0.0
      %1157 = vmatpush1.msra.mxu0 %v945
      %1158 = vmatprep.subr.mxu0 0.0
      %1159 = vmatpush1.msra.mxu0 %v946
      %1160 = vmatprep.subr.mxu0 0.0
      %1161 = vmatpush1.msra.mxu0 %v947
      %1162 = vmatprep.subr.mxu0 0.0
      %1163 = vmatpush1.msra.mxu0 %v948
      %1164 = vmatprep.subr.mxu0 0.0
      %1165 = vmatpush1.msra.mxu0 %v949
      %1166 = vmatprep.subr.mxu0 0.0
      %1167 = vmatpush1.msra.mxu0 %v950
      %1168 = vmatprep.subr.mxu0 0.0
      %1169 = vmatpush1.msra.mxu0 %v951
      %1170 = vmatprep.subr.mxu0 0.0
      %1171 = vmatpush1.msra.mxu0 %v952
      %1172 = vmatprep.subr.mxu0 0.0
      %1173 = vmatpush1.msra.mxu0 %v953
      %1174 = vmatprep.subr.mxu0 0.0
      %1175 = vmatpush1.msra.mxu0 %v954
      %1176 = vmatprep.subr.mxu0 0.0
      %1177 = vmatpush1.msra.mxu0 %v955
      %1178 = vmatprep.subr.mxu0 0.0
      %1179 = vmatpush1.msra.mxu0 %v956
      %1180 = vmatprep.subr.mxu0 0.0
      %1181 = vmatpush1.msra.mxu0 %v957
      %1182 = vmatprep.subr.mxu0 0.0
      %1183 = vmatpush1.msra.mxu0 %v958
      %1184 = vmatprep.subr.mxu0 0.0
      %1185 = vmatpush1.msra.mxu0 %v959
      %1186 = vmatprep.subr.mxu0 0.0
      %1187 = vmatpush1.msra.mxu0 %v960
      %1188 = vmatprep.subr.mxu0 0.0
      %1189 = vmatpush1.msra.mxu0 %v961
      %1190 = vmatprep.subr.mxu0 0.0
      %1191 = vmatpush1.msra.mxu0 %v962
      %1192 = vmatprep.subr.mxu0 0.0
      %1193 = vmatpush1.msra.mxu0 %v963
      %1194 = vmatprep.subr.mxu0 0.0
      %1195 = vmatpush1.msra.mxu0 %v964
      %1196 = vmatprep.subr.mxu0 0.0
      %1197 = vmatpush1.msra.mxu0 %v965
      %1198 = vmatprep.subr.mxu0 0.0
      %1199 = vmatpush1.msra.mxu0 %v966
      %1200 = vmatprep.subr.mxu0 0.0
      %1201 = vmatpush1.msra.mxu0 %v967
      %1202 = vmatprep.subr.mxu0 0.0
      %1203 = vmatpush1.msra.mxu0 %v968
      %1204 = vmatprep.subr.mxu0 0.0
      %1205 = vmatpush1.msra.mxu0 %v969
      %1206 = vmatprep.subr.mxu0 0.0
      %1207 = vmatpush1.msra.mxu0 %v970
      %1208 = vmatprep.subr.mxu0 0.0
      %1209 = vmatpush1.msra.mxu0 %v971
      %1210 = vmatprep.subr.mxu0 0.0
      %1211 = vmatpush1.msra.mxu0 %v972
      %1212 = vmatprep.subr.mxu0 0.0
      %1213 = vmatpush1.msra.mxu0 %v973
      %1214 = vmatprep.subr.mxu0 0.0
      %1215 = vmatpush1.msra.mxu0 %v974
      %1216 = vmatprep.subr.mxu0 0.0
      %1217 = vmatpush1.msra.mxu0 %v975
      %1218 = vmatprep.subr.mxu0 0.0
      %1219 = vmatpush1.msra.mxu0 %v976
      %1220 = vmatprep.mubr.f32.mxu0 %v878
      %1221 = vmatmul.mubr.f32.gmra.mrb[0].mxu0 %v877
      %v1222 = vpop.f32.mrb[0].mxu0
      %v1223 = vadd.f32 %v1153, %v1222
      %v1224 = vpop.f32.mrb[0].mxu0
      %1225 = vdwg.mxu0
      %1226 = vmatprep.subr.mxu0 0.0
      %1227 = vmatpush1.msra.mxu0 %v977
      %1228 = vmatprep.subr.mxu0 0.0
      %1229 = vmatpush1.msra.mxu0 %v978
      %1230 = vmatprep.subr.mxu0 0.0
      %1231 = vmatpush1.msra.mxu0 %v979
      %1232 = vmatprep.subr.mxu0 0.0
      %1233 = vmatpush1.msra.mxu0 %v980
      %1234 = vmatprep.subr.mxu0 0.0
      %1235 = vmatpush1.msra.mxu0 %v981
      %1236 = vmatprep.subr.mxu0 0.0
      %1237 = vmatpush1.msra.mxu0 %v982
      %1238 = vmatprep.subr.mxu0 0.0
      %1239 = vmatpush1.msra.mxu0 %v983
      %1240 = vmatprep.subr.mxu0 0.0
      %1241 = vmatpush1.msra.mxu0 %v984
      %1242 = vmatprep.subr.mxu0 0.0
      %1243 = vmatpush1.msra.mxu0 %v985
      %1244 = vmatprep.subr.mxu0 0.0
      %1245 = vmatpush1.msra.mxu0 %v986
      %1246 = vmatprep.subr.mxu0 0.0
      %1247 = vmatpush1.msra.mxu0 %v987
      %1248 = vmatprep.subr.mxu0 0.0
      %1249 = vmatpush1.msra.mxu0 %v988
      %1250 = vmatprep.subr.mxu0 0.0
      %1251 = vmatpush1.msra.mxu0 %v989
      %1252 = vmatprep.subr.mxu0 0.0
      %1253 = vmatpush1.msra.mxu0 %v990
      %1254 = vmatprep.subr.mxu0 0.0
      %1255 = vmatpush1.msra.mxu0 %v991
      %1256 = vmatprep.subr.mxu0 0.0
      %1257 = vmatpush1.msra.mxu0 %v992
      %1258 = vmatprep.subr.mxu0 0.0
      %1259 = vmatpush1.msra.mxu0 %v993
      %1260 = vmatprep.subr.mxu0 0.0
      %1261 = vmatpush1.msra.mxu0 %v994
      %1262 = vmatprep.subr.mxu0 0.0
      %1263 = vmatpush1.msra.mxu0 %v995
      %1264 = vmatprep.subr.mxu0 0.0
      %1265 = vmatpush1.msra.mxu0 %v996
      %1266 = vmatprep.subr.mxu0 0.0
      %1267 = vmatpush1.msra.mxu0 %v997
      %1268 = vmatprep.subr.mxu0 0.0
      %1269 = vmatpush1.msra.mxu0 %v998
      %1270 = vmatprep.subr.mxu0 0.0
      %1271 = vmatpush1.msra.mxu0 %v999
      %1272 = vmatprep.subr.mxu0 0.0
      %1273 = vmatpush1.msra.mxu0 %v1000
      %1274 = vmatprep.subr.mxu0 0.0
      %1275 = vmatpush1.msra.mxu0 %v1001
      %1276 = vmatprep.subr.mxu0 0.0
      %1277 = vmatpush1.msra.mxu0 %v1002
      %1278 = vmatprep.subr.mxu0 0.0
      %1279 = vmatpush1.msra.mxu0 %v1003
      %1280 = vmatprep.subr.mxu0 0.0
      %1281 = vmatpush1.msra.mxu0 %v1004
      %1282 = vmatprep.subr.mxu0 0.0
      %1283 = vmatpush1.msra.mxu0 %v1005
      %1284 = vmatprep.subr.mxu0 0.0
      %1285 = vmatpush1.msra.mxu0 %v1006
      %1286 = vmatprep.subr.mxu0 0.0
      %1287 = vmatpush1.msra.mxu0 %v1007
      %1288 = vmatprep.subr.mxu0 0.0
      %1289 = vmatpush1.msra.mxu0 %v1008
      %1290 = vmatprep.mubr.f32.mxu0 %v880
      %1291 = vmatmul.mubr.f32.gmra.mrb[0].mxu0 %v879
      %v1292 = vpop.f32.mrb[0].mxu0
      %v1293 = vadd.f32 %v1223, %v1292
      %v1294 = vpop.f32.mrb[0].mxu0
      %1295 = vdwg.mxu0
      %1296 = vst [vmem:[%s249] sm:$0xff] %v1293
      %p1297 = scmp.lt.s32.totalorder %s17, 1
      %s1298 = scalar_select %p1297, %s17, 1
      %s1299 = smul.addr %s1298, 8
      %s1300 = scalar_lea.vmem %s6, %s1299
      // Predicated region
      $region45: #{_fused_forward.1} parent=43 // pred_check
        %p1301 = pneg %p166
      $region46: #{_fused_forward.1} parent=43 // pred_check_branch
        %1303 = sbr.rel (%p1301) target = $region48
      $region47: #{_fused_forward.1} parent=43 // pred_region
        _
      $region48: #{_fused_forward.1} parent=43 // pred_fallthru
        _
    $region44: #{_fused_forward.1} parent=5 // pred_fallthru
      _
    %p1304 = scmp.le.s32.totalorder 2, %s12
    // Predicated region
    $region49: #{_fused_forward.1} parent=5 // pred_check
      %p1305 = pneg %p1304
    $region50: #{_fused_forward.1} parent=5 // pred_check_branch
      %1307 = sbr.rel (%p1305) target = $region52
    $region51: #{_fused_forward.1} parent=5 // pred_region
      %s1308 = ssub.s32 %s12, 2
      // Predicated region
      $region53: #{_fused_forward.1} parent=51 // pred_check
        %p1309 = pneg %p172
      $region54: #{_fused_forward.1} parent=51 // pred_check_branch
        %1311 = sbr.rel (%p1309) target = $region56
      $region55: #{_fused_forward.1} parent=51 // pred_region
        %p1312 = scmp.lt.s32.totalorder %s18, 1
        %s1313 = scalar_select %p1312, %s18, 1
        %s1314 = smul.addr %s1313, 8
        %s1315 = scalar_lea.vmem %s6, %s1314
      $region56: #{_fused_forward.1} parent=51 // pred_fallthru
        _
    $region52: #{_fused_forward.1} parent=5 // pred_fallthru
      _
  $region6: #{_fused_forward.1} parent=0 // loop_footer
    %s16 = sadd.s32 1, %s12
  $region7: #{_fused_forward.1} parent=0 // loop_footer_branch
    %11 = sbr.rel target = $region3
  $region8: #{_fused_forward.1} parent=0 // loop_exit
    _

</llo_original>
